<compile_context>
chip_gen: v6e
topology: v6e:2x2x1
jax: 0.10.0
libtpu: 0.0.40
codegen_flags: <defaults>
</compile_context>

<pallas_src>
import functools

import jax
import jax.numpy as jnp
from jax.experimental import pallas as pl
from jax.experimental.pallas import tpu as pltpu


# ----------------------------- Pallas kernel -------------------------------

def rnn_network_kernel(x_ref,      # (T*B, obs_dim)  time-major rows (t major, b minor)
                       wx_ref,     # (obs_dim, 4H)   folded: norm + fc_input + w_ih
                       bx_ref,     # (1, 4H)         folded: b_in@w_ih + b_ih + b_hh
                       whh_ref,    # (H, 4H)         recurrent weight
                       wo_ref,     # (H, act_dim)    folded: w_out * out_scale
                       bo_ref,     # (1, act_dim)    folded: b_out*out_scale + out_shift
                       out_ref,    # (T*B, act_dim)
                       xp_ref,     # VMEM scratch (T*B, 4H)  batched input projection
                       hs_ref,     # VMEM scratch (T*B, H)   stacked hidden states
                       *, seq_len, batch):
    hidden = whh_ref.shape[0]

    # ---- batched input path: one MXU matmul for every timestep at once ----
    xp_ref[...] = (jnp.dot(x_ref[...], wx_ref[...],
                           preferred_element_type=jnp.float32) + bx_ref[...])

    # Gate-activation mask (tanh for the g-gate lanes, sigmoid elsewhere),
    # hoisted out of the loop (broadcasts are not CSE'd by JAX).
    lane = jax.lax.broadcasted_iota(jnp.int32, (batch, 4 * hidden), 1)
    g_mask = jnp.logical_and(lane >= 2 * hidden, lane < 3 * hidden)

    h0 = jnp.zeros((batch, hidden), jnp.float32)
    c0 = jnp.zeros((batch, hidden), jnp.float32)

    def step(t, carry):
        h, c = carry
        row = t * batch
        # Only truly-recurrent work on the serial path: (B,H) @ (H,4H).
        gates = xp_ref[pl.ds(row, batch), :] + jnp.dot(
            h, whh_ref[...], preferred_element_type=jnp.float32)
        # Full-vreg activations, then split into gates (i, f, g, o).
        act = jnp.where(g_mask, jnp.tanh(gates), jax.nn.sigmoid(gates))
        i_g = act[:, 0 * hidden:1 * hidden]
        f_g = act[:, 1 * hidden:2 * hidden]
        g_g = act[:, 2 * hidden:3 * hidden]
        o_g = act[:, 3 * hidden:4 * hidden]
        c_new = f_g * c + i_g * g_g
        h_new = o_g * jnp.tanh(c_new)
        hs_ref[pl.ds(row, batch), :] = h_new
        return (h_new, c_new)

    jax.lax.fori_loop(0, seq_len, step, (h0, c0), unroll=True)

    # ---- batched output path: one matmul over all stacked hidden states ----
    out_ref[...] = (jnp.dot(hs_ref[...], wo_ref[...],
                            preferred_element_type=jnp.float32) + bo_ref[...])


# ------------------------------- wrapper ------------------------------------

def rnn_network_forward(x, params):
    """x: (B, T, obs_dim) float32 -> (B, T, act_dim) float32."""
    B, T, obs_dim = x.shape
    H = params["w_hh"].shape[0]
    act_dim = params["w_out"].shape[1]

    # ---- fold constants (done once, outside the kernel / recurrence) ----
    inv = 1.0 / (params["in_scale"] + 1e-8)                       # (1, obs)
    w_in_fold = params["w_in"] * inv[0][:, None]                  # (obs, In)
    b_in_fold = params["b_in"] - (params["in_shift"] * inv) @ params["w_in"]
    w_x = w_in_fold @ params["w_ih"]                              # (obs, 4H)
    b_x = b_in_fold @ params["w_ih"] + params["b_ih"] + params["b_hh"]
    w_o = params["w_out"] * params["out_scale"]                   # (H, act)
    b_o = params["b_out"] * params["out_scale"] + params["out_shift"]

    # time-major rows: row index = t*B + b
    x2 = jnp.transpose(x, (1, 0, 2)).reshape(T * B, obs_dim)

    out2 = pl.pallas_call(
        functools.partial(rnn_network_kernel, seq_len=T, batch=B),
        out_shape=jax.ShapeDtypeStruct((T * B, act_dim), jnp.float32),
        scratch_shapes=[
            pltpu.VMEM((T * B, 4 * H), jnp.float32),   # x projection
            pltpu.VMEM((T * B, H), jnp.float32),       # stacked hidden states
        ],
    )(x2, w_x, b_x, params["w_hh"], w_o, b_o)

    return jnp.transpose(out2.reshape(T, B, act_dim), (1, 0, 2))


# ------------------------- pure-JAX reference --------------------------------

def rnn_network_reference(x, params):
    H = params["w_hh"].shape[0]
    xn = (x - params["in_shift"][0]) / (params["in_scale"][0] + 1e-8)
    xin = xn @ params["w_in"] + params["b_in"][0]                 # (B, T, In)

    def step(carry, xt):
        h, c = carry
        gates = (xt @ params["w_ih"] + params["b_ih"][0]
                 + h @ params["w_hh"] + params["b_hh"][0])
        i = jax.nn.sigmoid(gates[:, 0 * H:1 * H])
        f = jax.nn.sigmoid(gates[:, 1 * H:2 * H])
        g = jnp.tanh(gates[:, 2 * H:3 * H])
        o = jax.nn.sigmoid(gates[:, 3 * H:4 * H])
        c = f * c + i * g
        h = o * jnp.tanh(c)
        return (h, c), h

    B = x.shape[0]
    h0 = jnp.zeros((B, H), jnp.float32)
    c0 = jnp.zeros((B, H), jnp.float32)
    _, hs = jax.lax.scan(step, (h0, c0), jnp.swapaxes(xin, 0, 1))  # (T, B, H)
    outs = jnp.swapaxes(hs, 0, 1) @ params["w_out"] + params["b_out"][0]
    return outs * params["out_scale"][0] + params["out_shift"][0]


# --------------------------------- main --------------------------------------

if __name__ == "__main__":
    B, T = 2, 8          # batch, sequence length
    OBS_DIM = 16         # env.spec.observation_dim
    ACT_DIM = 8          # env.spec.action_dim
    IN_SIZE = 32         # rnn_cell.input_size
    HID = 32             # rnn_cell.hidden_size  (num_layers = 1)

    key = jax.random.PRNGKey(0)
    keys = jax.random.split(key, 10)

    def uinit(k, shape, fan_in):
        bound = 1.0 / jnp.sqrt(jnp.float32(fan_in))
        return jax.random.uniform(k, shape, jnp.float32, -bound, bound)

    # Weights stored pre-transposed relative to torch (so math is x @ W).
    params = dict(
        # fc_input_layer: Linear(obs_dim -> input_size)
        w_in=uinit(keys[0], (OBS_DIM, IN_SIZE), OBS_DIM),
        b_in=uinit(keys[1], (1, IN_SIZE), OBS_DIM),
        # LSTM layer 0 (gate order i, f, g, o)
        w_ih=uinit(keys[2], (IN_SIZE, 4 * HID), HID),
        b_ih=uinit(keys[3], (1, 4 * HID), HID),
        w_hh=uinit(keys[4], (HID, 4 * HID), HID),
        b_hh=uinit(keys[5], (1, 4 * HID), HID),
        # fc_output_layer: Linear(hidden_size -> act_dim)
        w_out=uinit(keys[6], (HID, ACT_DIM), HID),
        b_out=uinit(keys[7], (1, ACT_DIM), HID),
        # transformations (defaults: shift=0, scale=1)
        in_shift=jnp.zeros((1, OBS_DIM), jnp.float32),
        in_scale=jnp.ones((1, OBS_DIM), jnp.float32),
        out_shift=jnp.zeros((1, ACT_DIM), jnp.float32),
        out_scale=jnp.ones((1, ACT_DIM), jnp.float32),
    )

    x = jax.random.normal(keys[8], (B, T, OBS_DIM), jnp.float32)

    out = rnn_network_forward(x, params)
    out = jax.block_until_ready(out)

    ref = rnn_network_reference(x, params)
    assert out.shape == (B, T, ACT_DIM), out.shape
    # slightly relaxed tolerance: weight folding reassociates f32 sums
    assert jnp.allclose(out, ref, atol=2e-5, rtol=2e-5), \
        float(jnp.max(jnp.abs(out - ref)))

    print("KERNEL_OK")
</pallas_src>

<mosaic_0001>
module attributes {stable_mosaic.version = 11 : i64} {
  func.func @rnn_network_kernel(%arg0: memref<16x16xf32, #tpu.memory_space<vmem>>, %arg1: memref<16x128xf32, #tpu.memory_space<vmem>>, %arg2: memref<1x128xf32, #tpu.memory_space<vmem>>, %arg3: memref<32x128xf32, #tpu.memory_space<vmem>>, %arg4: memref<32x8xf32, #tpu.memory_space<vmem>>, %arg5: memref<1x8xf32, #tpu.memory_space<vmem>>, %arg6: memref<16x8xf32, #tpu.memory_space<vmem>>, %arg7: memref<16x128xf32, #tpu.memory_space<vmem>>, %arg8: memref<16x32xf32, #tpu.memory_space<vmem>>) attributes {dimension_semantics = [], scalar_prefetch = 0 : i64, scratch_operands = 2 : i64, tpu.core_type = #tpu.core_type<tc>} {
    %c0 = arith.constant 0 : index
    %c0_0 = arith.constant 0 : index
    %0 = vector.load %arg0[%c0, %c0_0] : memref<16x16xf32, #tpu.memory_space<vmem>>, vector<16x16xf32>
    %c0_1 = arith.constant 0 : index
    %c0_2 = arith.constant 0 : index
    %1 = vector.load %arg1[%c0_1, %c0_2] : memref<16x128xf32, #tpu.memory_space<vmem>>, vector<16x128xf32>
    %cst = arith.constant dense<0.000000e+00> : vector<16x128xf32>
    %2 = tpu.matmul %0, %1, %cst {dimension_numbers = #tpu.dot_dimension_numbers<[1], [0], [0], [1], [0, 0, 1, 1], [], []>} : vector<16x16xf32>, vector<16x128xf32>, vector<16x128xf32> -> vector<16x128xf32>
    %c0_3 = arith.constant 0 : index
    %c0_4 = arith.constant 0 : index
    %3 = vector.load %arg2[%c0_3, %c0_4] : memref<1x128xf32, #tpu.memory_space<vmem>>, vector<1x128xf32>
    %4 = vector.broadcast %3 : vector<1x128xf32> to vector<16x128xf32>
    %5 = arith.addf %2, %4 : vector<16x128xf32>
    %c0_5 = arith.constant 0 : index
    %c0_6 = arith.constant 0 : index
    %6 = vector.load %arg7[%c0_5, %c0_6] : memref<16x128xf32, #tpu.memory_space<vmem>>, vector<16x128xf32>
    tpu.vector_store %arg7[%c0_5, %c0_6], %5 {strides = array<i32>} : memref<16x128xf32, #tpu.memory_space<vmem>>, vector<16x128xf32>,
    %7 = tpu.iota {dimensions = array<i32: 1>} : vector<2x128xi32>
    %c64_i32 = arith.constant 64 : i32
    %8 = vector.broadcast %c64_i32 : i32 to vector<2x128xi32>
    %9 = arith.cmpi sge, %7, %8 : vector<2x128xi32>
    %c96_i32 = arith.constant 96 : i32
    %10 = vector.broadcast %c96_i32 : i32 to vector<2x128xi32>
    %11 = arith.cmpi slt, %7, %10 : vector<2x128xi32>
    %12 = arith.andi %9, %11 : vector<2x128xi1>
    %cst_7 = arith.constant 0.000000e+00 : f32
    %13 = vector.broadcast %cst_7 : f32 to vector<2x32xf32>
    %cst_8 = arith.constant 0.000000e+00 : f32
    %14 = vector.broadcast %cst_8 : f32 to vector<2x32xf32>
    %c0_i32 = arith.constant 0 : i32
    %c2_i32 = arith.constant 2 : i32
    %15 = arith.muli %c0_i32, %c2_i32 : i32
    %16 = arith.index_cast %15 : i32 to index
    %c0_9 = arith.constant 0 : index
    %17 = vector.load %arg7[%16, %c0_9] : memref<16x128xf32, #tpu.memory_space<vmem>>, vector<2x128xf32>
    %c0_10 = arith.constant 0 : index
    %c0_11 = arith.constant 0 : index
    %18 = vector.load %arg3[%c0_10, %c0_11] : memref<32x128xf32, #tpu.memory_space<vmem>>, vector<32x128xf32>
    %cst_12 = arith.constant dense<0.000000e+00> : vector<2x128xf32>
    %19 = tpu.matmul %13, %18, %cst_12 {dimension_numbers = #tpu.dot_dimension_numbers<[1], [0], [0], [1], [0, 0, 1, 1], [], []>} : vector<2x32xf32>, vector<32x128xf32>, vector<2x128xf32> -> vector<2x128xf32>
    %20 = arith.addf %17, %19 : vector<2x128xf32>
    %21 = math.tanh %20 : vector<2x128xf32>
    %22 = arith.negf %20 : vector<2x128xf32>
    %23 = math.exp %22 : vector<2x128xf32>
    %cst_13 = arith.constant 1.000000e+00 : f32
    %24 = vector.broadcast %cst_13 : f32 to vector<2x128xf32>
    %25 = arith.addf %24, %23 : vector<2x128xf32>
    %26 = arith.divf %24, %25 : vector<2x128xf32>
    %27 = arith.select %12, %21, %26 : vector<2x128xi1>, vector<2x128xf32>
    %28 = vector.extract_strided_slice %27 {offsets = [0, 0], sizes = [2, 32], strides = [1, 1]} : vector<2x128xf32> to vector<2x32xf32>
    %29 = vector.extract_strided_slice %27 {offsets = [0, 32], sizes = [2, 32], strides = [1, 1]} : vector<2x128xf32> to vector<2x32xf32>
    %30 = vector.extract_strided_slice %27 {offsets = [0, 64], sizes = [2, 32], strides = [1, 1]} : vector<2x128xf32> to vector<2x32xf32>
    %31 = vector.extract_strided_slice %27 {offsets = [0, 96], sizes = [2, 32], strides = [1, 1]} : vector<2x128xf32> to vector<2x32xf32>
    %32 = arith.mulf %29, %14 : vector<2x32xf32>
    %33 = arith.mulf %28, %30 : vector<2x32xf32>
    %34 = arith.addf %32, %33 : vector<2x32xf32>
    %35 = math.tanh %34 : vector<2x32xf32>
    %36 = arith.mulf %31, %35 : vector<2x32xf32>
    %37 = arith.index_cast %15 : i32 to index
    %c0_14 = arith.constant 0 : index
    %38 = vector.load %arg8[%37, %c0_14] : memref<16x32xf32, #tpu.memory_space<vmem>>, vector<2x32xf32>
    tpu.vector_store %arg8[%37, %c0_14], %36 {strides = array<i32>} : memref<16x32xf32, #tpu.memory_space<vmem>>, vector<2x32xf32>,
    %c1_i32 = arith.constant 1 : i32
    %c2_i32_15 = arith.constant 2 : i32
    %39 = arith.muli %c1_i32, %c2_i32_15 : i32
    %40 = arith.index_cast %39 : i32 to index
    %c0_16 = arith.constant 0 : index
    %41 = vector.load %arg7[%40, %c0_16] : memref<16x128xf32, #tpu.memory_space<vmem>>, vector<2x128xf32>
    %c0_17 = arith.constant 0 : index
    %c0_18 = arith.constant 0 : index
    %42 = vector.load %arg3[%c0_17, %c0_18] : memref<32x128xf32, #tpu.memory_space<vmem>>, vector<32x128xf32>
    %cst_19 = arith.constant dense<0.000000e+00> : vector<2x128xf32>
    %43 = tpu.matmul %36, %42, %cst_19 {dimension_numbers = #tpu.dot_dimension_numbers<[1], [0], [0], [1], [0, 0, 1, 1], [], []>} : vector<2x32xf32>, vector<32x128xf32>, vector<2x128xf32> -> vector<2x128xf32>
    %44 = arith.addf %41, %43 : vector<2x128xf32>
    %45 = math.tanh %44 : vector<2x128xf32>
    %46 = arith.negf %44 : vector<2x128xf32>
    %47 = math.exp %46 : vector<2x128xf32>
    %cst_20 = arith.constant 1.000000e+00 : f32
    %48 = vector.broadcast %cst_20 : f32 to vector<2x128xf32>
    %49 = arith.addf %48, %47 : vector<2x128xf32>
    %50 = arith.divf %48, %49 : vector<2x128xf32>
    %51 = arith.select %12, %45, %50 : vector<2x128xi1>, vector<2x128xf32>
    %52 = vector.extract_strided_slice %51 {offsets = [0, 0], sizes = [2, 32], strides = [1, 1]} : vector<2x128xf32> to vector<2x32xf32>
    %53 = vector.extract_strided_slice %51 {offsets = [0, 32], sizes = [2, 32], strides = [1, 1]} : vector<2x128xf32> to vector<2x32xf32>
    %54 = vector.extract_strided_slice %51 {offsets = [0, 64], sizes = [2, 32], strides = [1, 1]} : vector<2x128xf32> to vector<2x32xf32>
    %55 = vector.extract_strided_slice %51 {offsets = [0, 96], sizes = [2, 32], strides = [1, 1]} : vector<2x128xf32> to vector<2x32xf32>
    %56 = arith.mulf %53, %34 : vector<2x32xf32>
    %57 = arith.mulf %52, %54 : vector<2x32xf32>
    %58 = arith.addf %56, %57 : vector<2x32xf32>
    %59 = math.tanh %58 : vector<2x32xf32>
    %60 = arith.mulf %55, %59 : vector<2x32xf32>
    %61 = arith.index_cast %39 : i32 to index
    %c0_21 = arith.constant 0 : index
    %62 = vector.load %arg8[%61, %c0_21] : memref<16x32xf32, #tpu.memory_space<vmem>>, vector<2x32xf32>
    tpu.vector_store %arg8[%61, %c0_21], %60 {strides = array<i32>} : memref<16x32xf32, #tpu.memory_space<vmem>>, vector<2x32xf32>,
    %c2_i32_22 = arith.constant 2 : i32
    %c2_i32_23 = arith.constant 2 : i32
    %63 = arith.muli %c2_i32_22, %c2_i32_23 : i32
    %64 = arith.index_cast %63 : i32 to index
    %c0_24 = arith.constant 0 : index
    %65 = vector.load %arg7[%64, %c0_24] : memref<16x128xf32, #tpu.memory_space<vmem>>, vector<2x128xf32>
    %c0_25 = arith.constant 0 : index
    %c0_26 = arith.constant 0 : index
    %66 = vector.load %arg3[%c0_25, %c0_26] : memref<32x128xf32, #tpu.memory_space<vmem>>, vector<32x128xf32>
    %cst_27 = arith.constant dense<0.000000e+00> : vector<2x128xf32>
    %67 = tpu.matmul %60, %66, %cst_27 {dimension_numbers = #tpu.dot_dimension_numbers<[1], [0], [0], [1], [0, 0, 1, 1], [], []>} : vector<2x32xf32>, vector<32x128xf32>, vector<2x128xf32> -> vector<2x128xf32>
    %68 = arith.addf %65, %67 : vector<2x128xf32>
    %69 = math.tanh %68 : vector<2x128xf32>
    %70 = arith.negf %68 : vector<2x128xf32>
    %71 = math.exp %70 : vector<2x128xf32>
    %cst_28 = arith.constant 1.000000e+00 : f32
    %72 = vector.broadcast %cst_28 : f32 to vector<2x128xf32>
    %73 = arith.addf %72, %71 : vector<2x128xf32>
    %74 = arith.divf %72, %73 : vector<2x128xf32>
    %75 = arith.select %12, %69, %74 : vector<2x128xi1>, vector<2x128xf32>
    %76 = vector.extract_strided_slice %75 {offsets = [0, 0], sizes = [2, 32], strides = [1, 1]} : vector<2x128xf32> to vector<2x32xf32>
    %77 = vector.extract_strided_slice %75 {offsets = [0, 32], sizes = [2, 32], strides = [1, 1]} : vector<2x128xf32> to vector<2x32xf32>
    %78 = vector.extract_strided_slice %75 {offsets = [0, 64], sizes = [2, 32], strides = [1, 1]} : vector<2x128xf32> to vector<2x32xf32>
    %79 = vector.extract_strided_slice %75 {offsets = [0, 96], sizes = [2, 32], strides = [1, 1]} : vector<2x128xf32> to vector<2x32xf32>
    %80 = arith.mulf %77, %58 : vector<2x32xf32>
    %81 = arith.mulf %76, %78 : vector<2x32xf32>
    %82 = arith.addf %80, %81 : vector<2x32xf32>
    %83 = math.tanh %82 : vector<2x32xf32>
    %84 = arith.mulf %79, %83 : vector<2x32xf32>
    %85 = arith.index_cast %63 : i32 to index
    %c0_29 = arith.constant 0 : index
    %86 = vector.load %arg8[%85, %c0_29] : memref<16x32xf32, #tpu.memory_space<vmem>>, vector<2x32xf32>
    tpu.vector_store %arg8[%85, %c0_29], %84 {strides = array<i32>} : memref<16x32xf32, #tpu.memory_space<vmem>>, vector<2x32xf32>,
    %c3_i32 = arith.constant 3 : i32
    %c2_i32_30 = arith.constant 2 : i32
    %87 = arith.muli %c3_i32, %c2_i32_30 : i32
    %88 = arith.index_cast %87 : i32 to index
    %c0_31 = arith.constant 0 : index
    %89 = vector.load %arg7[%88, %c0_31] : memref<16x128xf32, #tpu.memory_space<vmem>>, vector<2x128xf32>
    %c0_32 = arith.constant 0 : index
    %c0_33 = arith.constant 0 : index
    %90 = vector.load %arg3[%c0_32, %c0_33] : memref<32x128xf32, #tpu.memory_space<vmem>>, vector<32x128xf32>
    %cst_34 = arith.constant dense<0.000000e+00> : vector<2x128xf32>
    %91 = tpu.matmul %84, %90, %cst_34 {dimension_numbers = #tpu.dot_dimension_numbers<[1], [0], [0], [1], [0, 0, 1, 1], [], []>} : vector<2x32xf32>, vector<32x128xf32>, vector<2x128xf32> -> vector<2x128xf32>
    %92 = arith.addf %89, %91 : vector<2x128xf32>
    %93 = math.tanh %92 : vector<2x128xf32>
    %94 = arith.negf %92 : vector<2x128xf32>
    %95 = math.exp %94 : vector<2x128xf32>
    %cst_35 = arith.constant 1.000000e+00 : f32
    %96 = vector.broadcast %cst_35 : f32 to vector<2x128xf32>
    %97 = arith.addf %96, %95 : vector<2x128xf32>
    %98 = arith.divf %96, %97 : vector<2x128xf32>
    %99 = arith.select %12, %93, %98 : vector<2x128xi1>, vector<2x128xf32>
    %100 = vector.extract_strided_slice %99 {offsets = [0, 0], sizes = [2, 32], strides = [1, 1]} : vector<2x128xf32> to vector<2x32xf32>
    %101 = vector.extract_strided_slice %99 {offsets = [0, 32], sizes = [2, 32], strides = [1, 1]} : vector<2x128xf32> to vector<2x32xf32>
    %102 = vector.extract_strided_slice %99 {offsets = [0, 64], sizes = [2, 32], strides = [1, 1]} : vector<2x128xf32> to vector<2x32xf32>
    %103 = vector.extract_strided_slice %99 {offsets = [0, 96], sizes = [2, 32], strides = [1, 1]} : vector<2x128xf32> to vector<2x32xf32>
    %104 = arith.mulf %101, %82 : vector<2x32xf32>
    %105 = arith.mulf %100, %102 : vector<2x32xf32>
    %106 = arith.addf %104, %105 : vector<2x32xf32>
    %107 = math.tanh %106 : vector<2x32xf32>
    %108 = arith.mulf %103, %107 : vector<2x32xf32>
    %109 = arith.index_cast %87 : i32 to index
    %c0_36 = arith.constant 0 : index
    %110 = vector.load %arg8[%109, %c0_36] : memref<16x32xf32, #tpu.memory_space<vmem>>, vector<2x32xf32>
    tpu.vector_store %arg8[%109, %c0_36], %108 {strides = array<i32>} : memref<16x32xf32, #tpu.memory_space<vmem>>, vector<2x32xf32>,
    %c4_i32 = arith.constant 4 : i32
    %c2_i32_37 = arith.constant 2 : i32
    %111 = arith.muli %c4_i32, %c2_i32_37 : i32
    %112 = arith.index_cast %111 : i32 to index
    %c0_38 = arith.constant 0 : index
    %113 = vector.load %arg7[%112, %c0_38] : memref<16x128xf32, #tpu.memory_space<vmem>>, vector<2x128xf32>
    %c0_39 = arith.constant 0 : index
    %c0_40 = arith.constant 0 : index
    %114 = vector.load %arg3[%c0_39, %c0_40] : memref<32x128xf32, #tpu.memory_space<vmem>>, vector<32x128xf32>
    %cst_41 = arith.constant dense<0.000000e+00> : vector<2x128xf32>
    %115 = tpu.matmul %108, %114, %cst_41 {dimension_numbers = #tpu.dot_dimension_numbers<[1], [0], [0], [1], [0, 0, 1, 1], [], []>} : vector<2x32xf32>, vector<32x128xf32>, vector<2x128xf32> -> vector<2x128xf32>
    %116 = arith.addf %113, %115 : vector<2x128xf32>
    %117 = math.tanh %116 : vector<2x128xf32>
    %118 = arith.negf %116 : vector<2x128xf32>
    %119 = math.exp %118 : vector<2x128xf32>
    %cst_42 = arith.constant 1.000000e+00 : f32
    %120 = vector.broadcast %cst_42 : f32 to vector<2x128xf32>
    %121 = arith.addf %120, %119 : vector<2x128xf32>
    %122 = arith.divf %120, %121 : vector<2x128xf32>
    %123 = arith.select %12, %117, %122 : vector<2x128xi1>, vector<2x128xf32>
    %124 = vector.extract_strided_slice %123 {offsets = [0, 0], sizes = [2, 32], strides = [1, 1]} : vector<2x128xf32> to vector<2x32xf32>
    %125 = vector.extract_strided_slice %123 {offsets = [0, 32], sizes = [2, 32], strides = [1, 1]} : vector<2x128xf32> to vector<2x32xf32>
    %126 = vector.extract_strided_slice %123 {offsets = [0, 64], sizes = [2, 32], strides = [1, 1]} : vector<2x128xf32> to vector<2x32xf32>
    %127 = vector.extract_strided_slice %123 {offsets = [0, 96], sizes = [2, 32], strides = [1, 1]} : vector<2x128xf32> to vector<2x32xf32>
    %128 = arith.mulf %125, %106 : vector<2x32xf32>
    %129 = arith.mulf %124, %126 : vector<2x32xf32>
    %130 = arith.addf %128, %129 : vector<2x32xf32>
    %131 = math.tanh %130 : vector<2x32xf32>
    %132 = arith.mulf %127, %131 : vector<2x32xf32>
    %133 = arith.index_cast %111 : i32 to index
    %c0_43 = arith.constant 0 : index
    %134 = vector.load %arg8[%133, %c0_43] : memref<16x32xf32, #tpu.memory_space<vmem>>, vector<2x32xf32>
    tpu.vector_store %arg8[%133, %c0_43], %132 {strides = array<i32>} : memref<16x32xf32, #tpu.memory_space<vmem>>, vector<2x32xf32>,
    %c5_i32 = arith.constant 5 : i32
    %c2_i32_44 = arith.constant 2 : i32
    %135 = arith.muli %c5_i32, %c2_i32_44 : i32
    %136 = arith.index_cast %135 : i32 to index
    %c0_45 = arith.constant 0 : index
    %137 = vector.load %arg7[%136, %c0_45] : memref<16x128xf32, #tpu.memory_space<vmem>>, vector<2x128xf32>
    %c0_46 = arith.constant 0 : index
    %c0_47 = arith.constant 0 : index
    %138 = vector.load %arg3[%c0_46, %c0_47] : memref<32x128xf32, #tpu.memory_space<vmem>>, vector<32x128xf32>
    %cst_48 = arith.constant dense<0.000000e+00> : vector<2x128xf32>
    %139 = tpu.matmul %132, %138, %cst_48 {dimension_numbers = #tpu.dot_dimension_numbers<[1], [0], [0], [1], [0, 0, 1, 1], [], []>} : vector<2x32xf32>, vector<32x128xf32>, vector<2x128xf32> -> vector<2x128xf32>
    %140 = arith.addf %137, %139 : vector<2x128xf32>
    %141 = math.tanh %140 : vector<2x128xf32>
    %142 = arith.negf %140 : vector<2x128xf32>
    %143 = math.exp %142 : vector<2x128xf32>
    %cst_49 = arith.constant 1.000000e+00 : f32
    %144 = vector.broadcast %cst_49 : f32 to vector<2x128xf32>
    %145 = arith.addf %144, %143 : vector<2x128xf32>
    %146 = arith.divf %144, %145 : vector<2x128xf32>
    %147 = arith.select %12, %141, %146 : vector<2x128xi1>, vector<2x128xf32>
    %148 = vector.extract_strided_slice %147 {offsets = [0, 0], sizes = [2, 32], strides = [1, 1]} : vector<2x128xf32> to vector<2x32xf32>
    %149 = vector.extract_strided_slice %147 {offsets = [0, 32], sizes = [2, 32], strides = [1, 1]} : vector<2x128xf32> to vector<2x32xf32>
    %150 = vector.extract_strided_slice %147 {offsets = [0, 64], sizes = [2, 32], strides = [1, 1]} : vector<2x128xf32> to vector<2x32xf32>
    %151 = vector.extract_strided_slice %147 {offsets = [0, 96], sizes = [2, 32], strides = [1, 1]} : vector<2x128xf32> to vector<2x32xf32>
    %152 = arith.mulf %149, %130 : vector<2x32xf32>
    %153 = arith.mulf %148, %150 : vector<2x32xf32>
    %154 = arith.addf %152, %153 : vector<2x32xf32>
    %155 = math.tanh %154 : vector<2x32xf32>
    %156 = arith.mulf %151, %155 : vector<2x32xf32>
    %157 = arith.index_cast %135 : i32 to index
    %c0_50 = arith.constant 0 : index
    %158 = vector.load %arg8[%157, %c0_50] : memref<16x32xf32, #tpu.memory_space<vmem>>, vector<2x32xf32>
    tpu.vector_store %arg8[%157, %c0_50], %156 {strides = array<i32>} : memref<16x32xf32, #tpu.memory_space<vmem>>, vector<2x32xf32>,
    %c6_i32 = arith.constant 6 : i32
    %c2_i32_51 = arith.constant 2 : i32
    %159 = arith.muli %c6_i32, %c2_i32_51 : i32
    %160 = arith.index_cast %159 : i32 to index
    %c0_52 = arith.constant 0 : index
    %161 = vector.load %arg7[%160, %c0_52] : memref<16x128xf32, #tpu.memory_space<vmem>>, vector<2x128xf32>
    %c0_53 = arith.constant 0 : index
    %c0_54 = arith.constant 0 : index
    %162 = vector.load %arg3[%c0_53, %c0_54] : memref<32x128xf32, #tpu.memory_space<vmem>>, vector<32x128xf32>
    %cst_55 = arith.constant dense<0.000000e+00> : vector<2x128xf32>
    %163 = tpu.matmul %156, %162, %cst_55 {dimension_numbers = #tpu.dot_dimension_numbers<[1], [0], [0], [1], [0, 0, 1, 1], [], []>} : vector<2x32xf32>, vector<32x128xf32>, vector<2x128xf32> -> vector<2x128xf32>
    %164 = arith.addf %161, %163 : vector<2x128xf32>
    %165 = math.tanh %164 : vector<2x128xf32>
    %166 = arith.negf %164 : vector<2x128xf32>
    %167 = math.exp %166 : vector<2x128xf32>
    %cst_56 = arith.constant 1.000000e+00 : f32
    %168 = vector.broadcast %cst_56 : f32 to vector<2x128xf32>
    %169 = arith.addf %168, %167 : vector<2x128xf32>
    %170 = arith.divf %168, %169 : vector<2x128xf32>
    %171 = arith.select %12, %165, %170 : vector<2x128xi1>, vector<2x128xf32>
    %172 = vector.extract_strided_slice %171 {offsets = [0, 0], sizes = [2, 32], strides = [1, 1]} : vector<2x128xf32> to vector<2x32xf32>
    %173 = vector.extract_strided_slice %171 {offsets = [0, 32], sizes = [2, 32], strides = [1, 1]} : vector<2x128xf32> to vector<2x32xf32>
    %174 = vector.extract_strided_slice %171 {offsets = [0, 64], sizes = [2, 32], strides = [1, 1]} : vector<2x128xf32> to vector<2x32xf32>
    %175 = vector.extract_strided_slice %171 {offsets = [0, 96], sizes = [2, 32], strides = [1, 1]} : vector<2x128xf32> to vector<2x32xf32>
    %176 = arith.mulf %173, %154 : vector<2x32xf32>
    %177 = arith.mulf %172, %174 : vector<2x32xf32>
    %178 = arith.addf %176, %177 : vector<2x32xf32>
    %179 = math.tanh %178 : vector<2x32xf32>
    %180 = arith.mulf %175, %179 : vector<2x32xf32>
    %181 = arith.index_cast %159 : i32 to index
    %c0_57 = arith.constant 0 : index
    %182 = vector.load %arg8[%181, %c0_57] : memref<16x32xf32, #tpu.memory_space<vmem>>, vector<2x32xf32>
    tpu.vector_store %arg8[%181, %c0_57], %180 {strides = array<i32>} : memref<16x32xf32, #tpu.memory_space<vmem>>, vector<2x32xf32>,
    %c7_i32 = arith.constant 7 : i32
    %c2_i32_58 = arith.constant 2 : i32
    %183 = arith.muli %c7_i32, %c2_i32_58 : i32
    %184 = arith.index_cast %183 : i32 to index
    %c0_59 = arith.constant 0 : index
    %185 = vector.load %arg7[%184, %c0_59] : memref<16x128xf32, #tpu.memory_space<vmem>>, vector<2x128xf32>
    %c0_60 = arith.constant 0 : index
    %c0_61 = arith.constant 0 : index
    %186 = vector.load %arg3[%c0_60, %c0_61] : memref<32x128xf32, #tpu.memory_space<vmem>>, vector<32x128xf32>
    %cst_62 = arith.constant dense<0.000000e+00> : vector<2x128xf32>
    %187 = tpu.matmul %180, %186, %cst_62 {dimension_numbers = #tpu.dot_dimension_numbers<[1], [0], [0], [1], [0, 0, 1, 1], [], []>} : vector<2x32xf32>, vector<32x128xf32>, vector<2x128xf32> -> vector<2x128xf32>
    %188 = arith.addf %185, %187 : vector<2x128xf32>
    %189 = math.tanh %188 : vector<2x128xf32>
    %190 = arith.negf %188 : vector<2x128xf32>
    %191 = math.exp %190 : vector<2x128xf32>
    %cst_63 = arith.constant 1.000000e+00 : f32
    %192 = vector.broadcast %cst_63 : f32 to vector<2x128xf32>
    %193 = arith.addf %192, %191 : vector<2x128xf32>
    %194 = arith.divf %192, %193 : vector<2x128xf32>
    %195 = arith.select %12, %189, %194 : vector<2x128xi1>, vector<2x128xf32>
    %196 = vector.extract_strided_slice %195 {offsets = [0, 0], sizes = [2, 32], strides = [1, 1]} : vector<2x128xf32> to vector<2x32xf32>
    %197 = vector.extract_strided_slice %195 {offsets = [0, 32], sizes = [2, 32], strides = [1, 1]} : vector<2x128xf32> to vector<2x32xf32>
    %198 = vector.extract_strided_slice %195 {offsets = [0, 64], sizes = [2, 32], strides = [1, 1]} : vector<2x128xf32> to vector<2x32xf32>
    %199 = vector.extract_strided_slice %195 {offsets = [0, 96], sizes = [2, 32], strides = [1, 1]} : vector<2x128xf32> to vector<2x32xf32>
    %200 = arith.mulf %197, %178 : vector<2x32xf32>
    %201 = arith.mulf %196, %198 : vector<2x32xf32>
    %202 = arith.addf %200, %201 : vector<2x32xf32>
    %203 = math.tanh %202 : vector<2x32xf32>
    %204 = arith.mulf %199, %203 : vector<2x32xf32>
    %205 = arith.index_cast %183 : i32 to index
    %c0_64 = arith.constant 0 : index
    %206 = vector.load %arg8[%205, %c0_64] : memref<16x32xf32, #tpu.memory_space<vmem>>, vector<2x32xf32>
    tpu.vector_store %arg8[%205, %c0_64], %204 {strides = array<i32>} : memref<16x32xf32, #tpu.memory_space<vmem>>, vector<2x32xf32>,
    %c8_i32 = arith.constant 8 : i32
    %c0_65 = arith.constant 0 : index
    %c0_66 = arith.constant 0 : index
    %207 = vector.load %arg8[%c0_65, %c0_66] : memref<16x32xf32, #tpu.memory_space<vmem>>, vector<16x32xf32>
    %c0_67 = arith.constant 0 : index
    %c0_68 = arith.constant 0 : index
    %208 = vector.load %arg4[%c0_67, %c0_68] : memref<32x8xf32, #tpu.memory_space<vmem>>, vector<32x8xf32>
    %cst_69 = arith.constant dense<0.000000e+00> : vector<16x8xf32>
    %209 = tpu.matmul %207, %208, %cst_69 {dimension_numbers = #tpu.dot_dimension_numbers<[1], [0], [0], [1], [0, 0, 1, 1], [], []>} : vector<16x32xf32>, vector<32x8xf32>, vector<16x8xf32> -> vector<16x8xf32>
    %c0_70 = arith.constant 0 : index
    %c0_71 = arith.constant 0 : index
    %210 = vector.load %arg5[%c0_70, %c0_71] : memref<1x8xf32, #tpu.memory_space<vmem>>, vector<1x8xf32>
    %211 = vector.broadcast %210 : vector<1x8xf32> to vector<16x8xf32>
    %212 = arith.addf %209, %211 : vector<16x8xf32>
    %c0_72 = arith.constant 0 : index
    %c0_73 = arith.constant 0 : index
    %213 = vector.load %arg6[%c0_72, %c0_73] : memref<16x8xf32, #tpu.memory_space<vmem>>, vector<16x8xf32>
    tpu.vector_store %arg6[%c0_72, %c0_73], %212 {strides = array<i32>} : memref<16x8xf32, #tpu.memory_space<vmem>>, vector<16x8xf32>,
    return
  }
}

</mosaic_0001>

<llo_original>
// kernel: tpu_custom_call.1
$region0: #{tpu_custom_call.1}
  #allocation0 [shape = 'u32[]', space=smem, size = 0x4, offset = 0x4, fixed_abs, tag = 'smem constant byte address 0x4 - core index']
  #allocation1 [shape = 'u32[144,128]{1,0:T(1,128)}', space=vmem, size = 0x12000, scoped, tag = 'internal scratch']
  #allocation2 [shape = 'f32[16,128]{1,0:T(8,128)}', space=vmem, size = 0x2000, scoped, tag = 'scratch operand']
  #allocation3 [shape = 'f32[16,32]{1,0:T(8,128)}', space=vmem, size = 0x2000, scoped, tag = 'scratch operand']
  %s0 = inlined_call_operand.hbm [shape: f32[16,16], index: 0, kind: input, shape index: {}]
  %s1 = inlined_call_operand.hbm [shape: f32[16,128], index: 1, kind: input, shape index: {}]
  %s2 = inlined_call_operand.vmem [shape: f32[1,128], index: 2, kind: input, shape index: {}]
  %s3 = inlined_call_operand.vmem [shape: f32[32,128], index: 3, kind: input, shape index: {}]
  %s4 = inlined_call_operand.vmem [shape: f32[32,8], index: 4, kind: input, shape index: {}]
  %s5 = inlined_call_operand.vmem [shape: f32[1,8], index: 5, kind: input, shape index: {}]
  %s6 = inlined_call_operand.vmem [shape: f32[16,8], index: 6, kind: output, shape index: {}]
  %s7 = sld [smem:[#allocation0]]
  $region42: #{tpu_custom_call.1} parent=0
    _
  %s9 = ssub.s32 1, %s7
  %s10 = scalar_select 0, %s9, %s7
  $region1: #{tpu_custom_call.1} parent=0
    #allocation4 [shape = 'u8[8192]{0}', space=vmem, size = 0x2000, scoped, tag = 'input window, operand 0, single buffered']
    #allocation5 [shape = 's32[1]{0}', space=sflag, size = 0x4, scoped, tag = 'scoped memory for tpu_custom_call.1']
    #allocation6 [shape = 'u8[8192]{0}', space=vmem, size = 0x2000, scoped, tag = 'input window, operand 1, single buffered']
    #allocation7 [shape = 's32[1]{0}', space=sflag, size = 0x4, scoped, tag = 'scoped memory for tpu_custom_call.1']
    %11 = vsyncpa [#allocation5], 0
    %12 = vsyncpa [#allocation7], 0
    // Predicated region
    $region2: #{tpu_custom_call.1} parent=1 // pred_check
      _
    $region3: #{tpu_custom_call.1} parent=1 // pred_check_branch
      %14 = sbr.rel (0) target = $region5
    $region4: #{tpu_custom_call.1} parent=1 // pred_region
      %s16 = ssub.s32 256, 256
      %17 = vsyncadd [#allocation5], %s16
      %s18 = sshll.u32 [#allocation4], 4
      %s19 = int_to_ptr.vmem [resolvable:$true] %s18
      %24 = dma.hbm_to_vmem [thread:$0]  %s0, 256, %s19, [#allocation5], 128, 128, 8
    $region5: #{tpu_custom_call.1} parent=1 // pred_fallthru
      _
    // Predicated region
    $region6: #{tpu_custom_call.1} parent=1 // pred_check
      _
    $region7: #{tpu_custom_call.1} parent=1 // pred_check_branch
      %26 = sbr.rel (0) target = $region9
    $region8: #{tpu_custom_call.1} parent=1 // pred_region
      %s28 = ssub.s32 256, 256
      %29 = vsyncadd [#allocation7], %s28
      %s30 = sshll.u32 [#allocation6], 4
      %s31 = int_to_ptr.vmem [resolvable:$true] %s30
      %36 = dma.hbm_to_vmem [thread:$0]  %s1, 256, %s31, [#allocation7], 128, 128, 8
    $region9: #{tpu_custom_call.1} parent=1 // pred_fallthru
      _
    // Predicated region
    $region10: #{tpu_custom_call.1} parent=1 // pred_check
      _
    $region11: #{tpu_custom_call.1} parent=1 // pred_check_branch
      %38 = sbr.rel (0) target = $region13
    $region12: #{tpu_custom_call.1} parent=1 // pred_region
      _
    $region13: #{tpu_custom_call.1} parent=1 // pred_fallthru
      _
    // Predicated region
    $region14: #{tpu_custom_call.1} parent=1 // pred_check
      _
    $region15: #{tpu_custom_call.1} parent=1 // pred_check_branch
      %40 = sbr.rel (0) target = $region17
    $region16: #{tpu_custom_call.1} parent=1 // pred_region
      _
    $region17: #{tpu_custom_call.1} parent=1 // pred_fallthru
      _
    // Predicated region
    $region18: #{tpu_custom_call.1} parent=1 // pred_check
      _
    $region19: #{tpu_custom_call.1} parent=1 // pred_check_branch
      %42 = sbr.rel (0) target = $region21
    $region20: #{tpu_custom_call.1} parent=1 // pred_region
      _
    $region21: #{tpu_custom_call.1} parent=1 // pred_fallthru
      _
    // Predicated region
    $region22: #{tpu_custom_call.1} parent=1 // pred_check
      _
    $region23: #{tpu_custom_call.1} parent=1 // pred_check_branch
      %44 = sbr.rel (0) target = $region25
    $region24: #{tpu_custom_call.1} parent=1 // pred_region
      _
    $region25: #{tpu_custom_call.1} parent=1 // pred_fallthru
      _
    // Predicated region
    $region26: #{tpu_custom_call.1} parent=1 // pred_check
      _
    $region27: #{tpu_custom_call.1} parent=1 // pred_check_branch
      %46 = sbr.rel (0) target = $region29
    $region28: #{tpu_custom_call.1} parent=1 // pred_region
      %47 = dma.done [#allocation5], 256
    $region29: #{tpu_custom_call.1} parent=1 // pred_fallthru
      _
    // Predicated region
    $region30: #{tpu_custom_call.1} parent=1 // pred_check
      _
    $region31: #{tpu_custom_call.1} parent=1 // pred_check_branch
      %49 = sbr.rel (0) target = $region33
    $region32: #{tpu_custom_call.1} parent=1 // pred_region
      %50 = dma.done [#allocation7], 256
    $region33: #{tpu_custom_call.1} parent=1 // pred_fallthru
      _
    %v51 = vld [vmem:[#allocation4] sm:$0xff]
    %v52 = vld [vmem:[#allocation4 + $0x8] sm:$0xff]
    %v53 = vld [vmem:[#allocation6] sm:$0xff]
    %v54 = vld [vmem:[#allocation6 + $0x8] sm:$0xff]
    %v55 = vld [vmem:[%s2] sm:$0x1]
    %v57 = vlaneseq
    %v58 = vshrl.u32 %v57, 7
    %v59 = vsub.s32 0, %v58
    %v60 = vrot.slane %v55, %v59
    %vm62 = vcmask 130048
    %v64 = vsel %vm62, %v51, 0
    %v67 = vsel %vm62, %v52, 0
    %69 = vmatprep.subr.mxu0 0.0
    %70 = vmatpush1.msra.mxu0 0.0
    %71 = vmatprep.subr.mxu0 0.0
    %72 = vmatpush1.msra.mxu0 0.0
    %73 = vmatprep.subr.mxu0 0.0
    %74 = vmatpush1.msra.mxu0 0.0
    %75 = vmatprep.subr.mxu0 0.0
    %76 = vmatpush1.msra.mxu0 0.0
    %77 = vmatprep.subr.mxu0 0.0
    %78 = vmatpush1.msra.mxu0 0.0
    %79 = vmatprep.subr.mxu0 0.0
    %80 = vmatpush1.msra.mxu0 0.0
    %81 = vmatprep.subr.mxu0 0.0
    %82 = vmatpush1.msra.mxu0 0.0
    %83 = vmatprep.subr.mxu0 0.0
    %84 = vmatpush1.msra.mxu0 0.0
    %85 = vmatprep.subr.mxu0 0.0
    %86 = vmatpush1.msra.mxu0 0.0
    %87 = vmatprep.subr.mxu0 0.0
    %88 = vmatpush1.msra.mxu0 0.0
    %89 = vmatprep.subr.mxu0 0.0
    %90 = vmatpush1.msra.mxu0 0.0
    %91 = vmatprep.subr.mxu0 0.0
    %92 = vmatpush1.msra.mxu0 0.0
    %93 = vmatprep.subr.mxu0 0.0
    %94 = vmatpush1.msra.mxu0 0.0
    %95 = vmatprep.subr.mxu0 0.0
    %96 = vmatpush1.msra.mxu0 0.0
    %97 = vmatprep.subr.mxu0 0.0
    %98 = vmatpush1.msra.mxu0 %v54
    %99 = vmatprep.subr.mxu0 0.0
    %100 = vmatpush1.msra.mxu0 %v53
    %101 = vmatprep.subr.mxu0 0.0
    %102 = vmatpush2.msra.mxu0 0.0
    %103 = vmatprep.subr.mxu0 0.0
    %104 = vmatpush2.msra.mxu0 0.0
    %105 = vmatprep.subr.mxu0 0.0
    %106 = vmatpush2.msra.mxu0 0.0
    %107 = vmatprep.subr.mxu0 0.0
    %108 = vmatpush2.msra.mxu0 0.0
    %109 = vmatprep.subr.mxu0 0.0
    %110 = vmatpush2.msra.mxu0 0.0
    %111 = vmatprep.subr.mxu0 0.0
    %112 = vmatpush2.msra.mxu0 0.0
    %113 = vmatprep.subr.mxu0 0.0
    %114 = vmatpush2.msra.mxu0 0.0
    %115 = vmatprep.subr.mxu0 0.0
    %116 = vmatpush2.msra.mxu0 0.0
    %117 = vmatprep.subr.mxu0 0.0
    %118 = vmatpush2.msra.mxu0 0.0
    %119 = vmatprep.subr.mxu0 0.0
    %120 = vmatpush2.msra.mxu0 0.0
    %121 = vmatprep.subr.mxu0 0.0
    %122 = vmatpush2.msra.mxu0 0.0
    %123 = vmatprep.subr.mxu0 0.0
    %124 = vmatpush2.msra.mxu0 0.0
    %125 = vmatprep.subr.mxu0 0.0
    %126 = vmatpush2.msra.mxu0 0.0
    %127 = vmatprep.subr.mxu0 0.0
    %128 = vmatpush2.msra.mxu0 0.0
    %129 = vmatprep.subr.mxu0 0.0
    %130 = vmatpush2.msra.mxu0 0.0
    %131 = vmatprep.subr.mxu0 0.0
    %132 = vmatpush2.msra.mxu0 0.0
    %133 = vmatprep.mubr.f32.mxu0 0.0
    %134 = vmatmul.mubr.f32.gmra.mxu0 %v64
    %v135 = vpop.f32.mrf.mxu0
    %v136 = vadd.f32 %v60, %v135
    %v137 = vpop.f32.mrf.mxu0
    %138 = vmatprep.mubr.f32.mxu0 0.0
    %139 = vmatmul.mubr.f32.gmra.mxu0 %v67
    %v140 = vpop.f32.mrf.mxu0
    %v141 = vadd.f32 %v60, %v140
    %v142 = vpop.f32.mrf.mxu0
    %143 = vdwg.mxu0
    %144 = vst [vmem:[#allocation2] sm:$0xff] %v136
    %145 = vst [vmem:[#allocation2 + $0x8] sm:$0xff] %v141
    %v146 = vlaneseq
    %v147 = vand.u32 %v146, 127
    %vm148 = vcmp.ge.s32.totalorder %v147, 64
    %vm149 = vcmp.lt.s32.totalorder %v147, 96
    %vm150 = vmand %vm148, %vm149
    %v151 = vld [vmem:[#allocation2] sm:$0x3]
    %v152 = vld [vmem:[%s3] sm:$0xff]
    %v153 = vld [vmem:[%s3 + $0x8] sm:$0xff]
    %v154 = vld [vmem:[%s3 + $0x10] sm:$0xff]
    %v155 = vld [vmem:[%s3 + $0x18] sm:$0xff]
    %vm156 = vcmask 261120
    %v158 = vsel %vm156, 0.0, 0
    %160 = vmatprep.subr.mxu0 0.0
    %161 = vmatpush1.msra.mxu0 0.0
    %162 = vmatprep.subr.mxu0 0.0
    %163 = vmatpush1.msra.mxu0 0.0
    %164 = vmatprep.subr.mxu0 0.0
    %165 = vmatpush1.msra.mxu0 0.0
    %166 = vmatprep.subr.mxu0 0.0
    %167 = vmatpush1.msra.mxu0 0.0
    %168 = vmatprep.subr.mxu0 0.0
    %169 = vmatpush1.msra.mxu0 0.0
    %170 = vmatprep.subr.mxu0 0.0
    %171 = vmatpush1.msra.mxu0 0.0
    %172 = vmatprep.subr.mxu0 0.0
    %173 = vmatpush1.msra.mxu0 0.0
    %174 = vmatprep.subr.mxu0 0.0
    %175 = vmatpush1.msra.mxu0 0.0
    %176 = vmatprep.subr.mxu0 0.0
    %177 = vmatpush1.msra.mxu0 0.0
    %178 = vmatprep.subr.mxu0 0.0
    %179 = vmatpush1.msra.mxu0 0.0
    %180 = vmatprep.subr.mxu0 0.0
    %181 = vmatpush1.msra.mxu0 0.0
    %182 = vmatprep.subr.mxu0 0.0
    %183 = vmatpush1.msra.mxu0 0.0
    %184 = vmatprep.subr.mxu0 0.0
    %185 = vmatpush1.msra.mxu0 %v155
    %186 = vmatprep.subr.mxu0 0.0
    %187 = vmatpush1.msra.mxu0 %v154
    %188 = vmatprep.subr.mxu0 0.0
    %189 = vmatpush1.msra.mxu0 %v153
    %190 = vmatprep.subr.mxu0 0.0
    %191 = vmatpush1.msra.mxu0 %v152
    %192 = vmatprep.subr.mxu0 0.0
    %193 = vmatpush2.msra.mxu0 0.0
    %194 = vmatprep.subr.mxu0 0.0
    %195 = vmatpush2.msra.mxu0 0.0
    %196 = vmatprep.subr.mxu0 0.0
    %197 = vmatpush2.msra.mxu0 0.0
    %198 = vmatprep.subr.mxu0 0.0
    %199 = vmatpush2.msra.mxu0 0.0
    %200 = vmatprep.subr.mxu0 0.0
    %201 = vmatpush2.msra.mxu0 0.0
    %202 = vmatprep.subr.mxu0 0.0
    %203 = vmatpush2.msra.mxu0 0.0
    %204 = vmatprep.subr.mxu0 0.0
    %205 = vmatpush2.msra.mxu0 0.0
    %206 = vmatprep.subr.mxu0 0.0
    %207 = vmatpush2.msra.mxu0 0.0
    %208 = vmatprep.subr.mxu0 0.0
    %209 = vmatpush2.msra.mxu0 0.0
    %210 = vmatprep.subr.mxu0 0.0
    %211 = vmatpush2.msra.mxu0 0.0
    %212 = vmatprep.subr.mxu0 0.0
    %213 = vmatpush2.msra.mxu0 0.0
    %214 = vmatprep.subr.mxu0 0.0
    %215 = vmatpush2.msra.mxu0 0.0
    %216 = vmatprep.subr.mxu0 0.0
    %217 = vmatpush2.msra.mxu0 0.0
    %218 = vmatprep.subr.mxu0 0.0
    %219 = vmatpush2.msra.mxu0 0.0
    %220 = vmatprep.subr.mxu0 0.0
    %221 = vmatpush2.msra.mxu0 0.0
    %222 = vmatprep.subr.mxu0 0.0
    %223 = vmatpush2.msra.mxu0 0.0
    %224 = vmatprep.mubr.f32.mxu0 0.0
    %225 = vmatmul.mubr.f32.gmra.mxu0 %v158
    %v226 = vpop.f32.mrf.mxu0
    %v227 = vadd.f32 0.0, %v226
    %v228 = vpop.f32.mrf.mxu0
    %229 = vdwg.mxu0
    %v230 = vadd.f32 %v151, %v227
    %v231 = vtanh.pop %v230
    %v232 = vxor.u32 %v230, 2147483648
    %v233 = vmul.f32 %v232, 1.442695
    %v234 = vpow.pop %v233
    %v235 = vadd.f32 %v234, 1.0
    %v236 = vrcp.pop %v235
    %v237 = vmul.f32 1.0, %v236
    %v238 = vsel %vm150, %v231, %v237
    %v239 = vmul.f32 %v238, 0.0
    %241 = vrot.lane.b32.xlu0 %v238, 64
    %v242 = vpop.permute.xlu0 %241
    %v244 = vmul.f32 %v238, %v242
    %246 = vrot.lane.b32.xlu0 %v244, 32
    %v247 = vpop.permute.xlu0 %246
    %v249 = vadd.f32 %v239, %v247
    %v250 = vtanh.pop %v249
    %252 = vrot.lane.b32.xlu0 %v250, 64
    %v253 = vpop.permute.xlu0 %252
    %v255 = vmul.f32 %v238, %v253
    %257 = vrot.lane.b32.xlu0 %v255, 32
    %v258 = vpop.permute.xlu0 %257
    %vm260 = vcmask 254976
    %261 = vst.msk [vmem:[#allocation3] sm:$0x3] %vm260, %v258
    %v262 = vld [vmem:[#allocation2 + $0x2] sm:$0x3]
    %v263 = vld [vmem:[%s3] sm:$0xff]
    %v264 = vld [vmem:[%s3 + $0x8] sm:$0xff]
    %v265 = vld [vmem:[%s3 + $0x10] sm:$0xff]
    %v266 = vld [vmem:[%s3 + $0x18] sm:$0xff]
    %v267 = vsel %vm156, %v258, 0
    %269 = vmatprep.subr.mxu0 0.0
    %270 = vmatpush1.msra.mxu0 0.0
    %271 = vmatprep.subr.mxu0 0.0
    %272 = vmatpush1.msra.mxu0 0.0
    %273 = vmatprep.subr.mxu0 0.0
    %274 = vmatpush1.msra.mxu0 0.0
    %275 = vmatprep.subr.mxu0 0.0
    %276 = vmatpush1.msra.mxu0 0.0
    %277 = vmatprep.subr.mxu0 0.0
    %278 = vmatpush1.msra.mxu0 0.0
    %279 = vmatprep.subr.mxu0 0.0
    %280 = vmatpush1.msra.mxu0 0.0
    %281 = vmatprep.subr.mxu0 0.0
    %282 = vmatpush1.msra.mxu0 0.0
    %283 = vmatprep.subr.mxu0 0.0
    %284 = vmatpush1.msra.mxu0 0.0
    %285 = vmatprep.subr.mxu0 0.0
    %286 = vmatpush1.msra.mxu0 0.0
    %287 = vmatprep.subr.mxu0 0.0
    %288 = vmatpush1.msra.mxu0 0.0
    %289 = vmatprep.subr.mxu0 0.0
    %290 = vmatpush1.msra.mxu0 0.0
    %291 = vmatprep.subr.mxu0 0.0
    %292 = vmatpush1.msra.mxu0 0.0
    %293 = vmatprep.subr.mxu0 0.0
    %294 = vmatpush1.msra.mxu0 %v266
    %295 = vmatprep.subr.mxu0 0.0
    %296 = vmatpush1.msra.mxu0 %v265
    %297 = vmatprep.subr.mxu0 0.0
    %298 = vmatpush1.msra.mxu0 %v264
    %299 = vmatprep.subr.mxu0 0.0
    %300 = vmatpush1.msra.mxu0 %v263
    %301 = vmatprep.subr.mxu0 0.0
    %302 = vmatpush2.msra.mxu0 0.0
    %303 = vmatprep.subr.mxu0 0.0
    %304 = vmatpush2.msra.mxu0 0.0
    %305 = vmatprep.subr.mxu0 0.0
    %306 = vmatpush2.msra.mxu0 0.0
    %307 = vmatprep.subr.mxu0 0.0
    %308 = vmatpush2.msra.mxu0 0.0
    %309 = vmatprep.subr.mxu0 0.0
    %310 = vmatpush2.msra.mxu0 0.0
    %311 = vmatprep.subr.mxu0 0.0
    %312 = vmatpush2.msra.mxu0 0.0
    %313 = vmatprep.subr.mxu0 0.0
    %314 = vmatpush2.msra.mxu0 0.0
    %315 = vmatprep.subr.mxu0 0.0
    %316 = vmatpush2.msra.mxu0 0.0
    %317 = vmatprep.subr.mxu0 0.0
    %318 = vmatpush2.msra.mxu0 0.0
    %319 = vmatprep.subr.mxu0 0.0
    %320 = vmatpush2.msra.mxu0 0.0
    %321 = vmatprep.subr.mxu0 0.0
    %322 = vmatpush2.msra.mxu0 0.0
    %323 = vmatprep.subr.mxu0 0.0
    %324 = vmatpush2.msra.mxu0 0.0
    %325 = vmatprep.subr.mxu0 0.0
    %326 = vmatpush2.msra.mxu0 0.0
    %327 = vmatprep.subr.mxu0 0.0
    %328 = vmatpush2.msra.mxu0 0.0
    %329 = vmatprep.subr.mxu0 0.0
    %330 = vmatpush2.msra.mxu0 0.0
    %331 = vmatprep.subr.mxu0 0.0
    %332 = vmatpush2.msra.mxu0 0.0
    %333 = vmatprep.mubr.f32.mxu0 0.0
    %334 = vmatmul.mubr.f32.gmra.mxu0 %v267
    %v335 = vpop.f32.mrf.mxu0
    %v336 = vadd.f32 0.0, %v335
    %v337 = vpop.f32.mrf.mxu0
    %338 = vdwg.mxu0
    %v339 = vadd.f32 %v262, %v336
    %v340 = vtanh.pop %v339
    %v341 = vxor.u32 %v339, 2147483648
    %v342 = vmul.f32 %v341, 1.442695
    %v343 = vpow.pop %v342
    %v344 = vadd.f32 %v343, 1.0
    %v345 = vrcp.pop %v344
    %v346 = vmul.f32 1.0, %v345
    %v347 = vsel %vm150, %v340, %v346
    %v348 = vmul.f32 %v347, %v249
    %350 = vrot.lane.b32.xlu0 %v347, 64
    %v351 = vpop.permute.xlu0 %350
    %v353 = vmul.f32 %v347, %v351
    %355 = vrot.lane.b32.xlu0 %v353, 32
    %v356 = vpop.permute.xlu0 %355
    %v358 = vadd.f32 %v348, %v356
    %v359 = vtanh.pop %v358
    %361 = vrot.lane.b32.xlu0 %v359, 64
    %v362 = vpop.permute.xlu0 %361
    %v364 = vmul.f32 %v347, %v362
    %366 = vrot.lane.b32.xlu0 %v364, 32
    %v367 = vpop.permute.xlu0 %366
    %369 = vst.msk [vmem:[#allocation3 + $0x2] sm:$0x3] %vm260, %v367
    %v370 = vld [vmem:[#allocation2 + $0x4] sm:$0x3]
    %v371 = vld [vmem:[%s3] sm:$0xff]
    %v372 = vld [vmem:[%s3 + $0x8] sm:$0xff]
    %v373 = vld [vmem:[%s3 + $0x10] sm:$0xff]
    %v374 = vld [vmem:[%s3 + $0x18] sm:$0xff]
    %v375 = vsel %vm156, %v367, 0
    %377 = vmatprep.subr.mxu0 0.0
    %378 = vmatpush1.msra.mxu0 0.0
    %379 = vmatprep.subr.mxu0 0.0
    %380 = vmatpush1.msra.mxu0 0.0
    %381 = vmatprep.subr.mxu0 0.0
    %382 = vmatpush1.msra.mxu0 0.0
    %383 = vmatprep.subr.mxu0 0.0
    %384 = vmatpush1.msra.mxu0 0.0
    %385 = vmatprep.subr.mxu0 0.0
    %386 = vmatpush1.msra.mxu0 0.0
    %387 = vmatprep.subr.mxu0 0.0
    %388 = vmatpush1.msra.mxu0 0.0
    %389 = vmatprep.subr.mxu0 0.0
    %390 = vmatpush1.msra.mxu0 0.0
    %391 = vmatprep.subr.mxu0 0.0
    %392 = vmatpush1.msra.mxu0 0.0
    %393 = vmatprep.subr.mxu0 0.0
    %394 = vmatpush1.msra.mxu0 0.0
    %395 = vmatprep.subr.mxu0 0.0
    %396 = vmatpush1.msra.mxu0 0.0
    %397 = vmatprep.subr.mxu0 0.0
    %398 = vmatpush1.msra.mxu0 0.0
    %399 = vmatprep.subr.mxu0 0.0
    %400 = vmatpush1.msra.mxu0 0.0
    %401 = vmatprep.subr.mxu0 0.0
    %402 = vmatpush1.msra.mxu0 %v374
    %403 = vmatprep.subr.mxu0 0.0
    %404 = vmatpush1.msra.mxu0 %v373
    %405 = vmatprep.subr.mxu0 0.0
    %406 = vmatpush1.msra.mxu0 %v372
    %407 = vmatprep.subr.mxu0 0.0
    %408 = vmatpush1.msra.mxu0 %v371
    %409 = vmatprep.subr.mxu0 0.0
    %410 = vmatpush2.msra.mxu0 0.0
    %411 = vmatprep.subr.mxu0 0.0
    %412 = vmatpush2.msra.mxu0 0.0
    %413 = vmatprep.subr.mxu0 0.0
    %414 = vmatpush2.msra.mxu0 0.0
    %415 = vmatprep.subr.mxu0 0.0
    %416 = vmatpush2.msra.mxu0 0.0
    %417 = vmatprep.subr.mxu0 0.0
    %418 = vmatpush2.msra.mxu0 0.0
    %419 = vmatprep.subr.mxu0 0.0
    %420 = vmatpush2.msra.mxu0 0.0
    %421 = vmatprep.subr.mxu0 0.0
    %422 = vmatpush2.msra.mxu0 0.0
    %423 = vmatprep.subr.mxu0 0.0
    %424 = vmatpush2.msra.mxu0 0.0
    %425 = vmatprep.subr.mxu0 0.0
    %426 = vmatpush2.msra.mxu0 0.0
    %427 = vmatprep.subr.mxu0 0.0
    %428 = vmatpush2.msra.mxu0 0.0
    %429 = vmatprep.subr.mxu0 0.0
    %430 = vmatpush2.msra.mxu0 0.0
    %431 = vmatprep.subr.mxu0 0.0
    %432 = vmatpush2.msra.mxu0 0.0
    %433 = vmatprep.subr.mxu0 0.0
    %434 = vmatpush2.msra.mxu0 0.0
    %435 = vmatprep.subr.mxu0 0.0
    %436 = vmatpush2.msra.mxu0 0.0
    %437 = vmatprep.subr.mxu0 0.0
    %438 = vmatpush2.msra.mxu0 0.0
    %439 = vmatprep.subr.mxu0 0.0
    %440 = vmatpush2.msra.mxu0 0.0
    %441 = vmatprep.mubr.f32.mxu0 0.0
    %442 = vmatmul.mubr.f32.gmra.mxu0 %v375
    %v443 = vpop.f32.mrf.mxu0
    %v444 = vadd.f32 0.0, %v443
    %v445 = vpop.f32.mrf.mxu0
    %446 = vdwg.mxu0
    %v447 = vadd.f32 %v370, %v444
    %v448 = vtanh.pop %v447
    %v449 = vxor.u32 %v447, 2147483648
    %v450 = vmul.f32 %v449, 1.442695
    %v451 = vpow.pop %v450
    %v452 = vadd.f32 %v451, 1.0
    %v453 = vrcp.pop %v452
    %v454 = vmul.f32 1.0, %v453
    %v455 = vsel %vm150, %v448, %v454
    %v456 = vmul.f32 %v455, %v358
    %458 = vrot.lane.b32.xlu0 %v455, 64
    %v459 = vpop.permute.xlu0 %458
    %v461 = vmul.f32 %v455, %v459
    %463 = vrot.lane.b32.xlu0 %v461, 32
    %v464 = vpop.permute.xlu0 %463
    %v466 = vadd.f32 %v456, %v464
    %v467 = vtanh.pop %v466
    %469 = vrot.lane.b32.xlu0 %v467, 64
    %v470 = vpop.permute.xlu0 %469
    %v472 = vmul.f32 %v455, %v470
    %474 = vrot.lane.b32.xlu0 %v472, 32
    %v475 = vpop.permute.xlu0 %474
    %477 = vst.msk [vmem:[#allocation3 + $0x4] sm:$0x3] %vm260, %v475
    %v478 = vld [vmem:[#allocation2 + $0x6] sm:$0x3]
    %v479 = vld [vmem:[%s3] sm:$0xff]
    %v480 = vld [vmem:[%s3 + $0x8] sm:$0xff]
    %v481 = vld [vmem:[%s3 + $0x10] sm:$0xff]
    %v482 = vld [vmem:[%s3 + $0x18] sm:$0xff]
    %v483 = vsel %vm156, %v475, 0
    %485 = vmatprep.subr.mxu0 0.0
    %486 = vmatpush1.msra.mxu0 0.0
    %487 = vmatprep.subr.mxu0 0.0
    %488 = vmatpush1.msra.mxu0 0.0
    %489 = vmatprep.subr.mxu0 0.0
    %490 = vmatpush1.msra.mxu0 0.0
    %491 = vmatprep.subr.mxu0 0.0
    %492 = vmatpush1.msra.mxu0 0.0
    %493 = vmatprep.subr.mxu0 0.0
    %494 = vmatpush1.msra.mxu0 0.0
    %495 = vmatprep.subr.mxu0 0.0
    %496 = vmatpush1.msra.mxu0 0.0
    %497 = vmatprep.subr.mxu0 0.0
    %498 = vmatpush1.msra.mxu0 0.0
    %499 = vmatprep.subr.mxu0 0.0
    %500 = vmatpush1.msra.mxu0 0.0
    %501 = vmatprep.subr.mxu0 0.0
    %502 = vmatpush1.msra.mxu0 0.0
    %503 = vmatprep.subr.mxu0 0.0
    %504 = vmatpush1.msra.mxu0 0.0
    %505 = vmatprep.subr.mxu0 0.0
    %506 = vmatpush1.msra.mxu0 0.0
    %507 = vmatprep.subr.mxu0 0.0
    %508 = vmatpush1.msra.mxu0 0.0
    %509 = vmatprep.subr.mxu0 0.0
    %510 = vmatpush1.msra.mxu0 %v482
    %511 = vmatprep.subr.mxu0 0.0
    %512 = vmatpush1.msra.mxu0 %v481
    %513 = vmatprep.subr.mxu0 0.0
    %514 = vmatpush1.msra.mxu0 %v480
    %515 = vmatprep.subr.mxu0 0.0
    %516 = vmatpush1.msra.mxu0 %v479
    %517 = vmatprep.subr.mxu0 0.0
    %518 = vmatpush2.msra.mxu0 0.0
    %519 = vmatprep.subr.mxu0 0.0
    %520 = vmatpush2.msra.mxu0 0.0
    %521 = vmatprep.subr.mxu0 0.0
    %522 = vmatpush2.msra.mxu0 0.0
    %523 = vmatprep.subr.mxu0 0.0
    %524 = vmatpush2.msra.mxu0 0.0
    %525 = vmatprep.subr.mxu0 0.0
    %526 = vmatpush2.msra.mxu0 0.0
    %527 = vmatprep.subr.mxu0 0.0
    %528 = vmatpush2.msra.mxu0 0.0
    %529 = vmatprep.subr.mxu0 0.0
    %530 = vmatpush2.msra.mxu0 0.0
    %531 = vmatprep.subr.mxu0 0.0
    %532 = vmatpush2.msra.mxu0 0.0
    %533 = vmatprep.subr.mxu0 0.0
    %534 = vmatpush2.msra.mxu0 0.0
    %535 = vmatprep.subr.mxu0 0.0
    %536 = vmatpush2.msra.mxu0 0.0
    %537 = vmatprep.subr.mxu0 0.0
    %538 = vmatpush2.msra.mxu0 0.0
    %539 = vmatprep.subr.mxu0 0.0
    %540 = vmatpush2.msra.mxu0 0.0
    %541 = vmatprep.subr.mxu0 0.0
    %542 = vmatpush2.msra.mxu0 0.0
    %543 = vmatprep.subr.mxu0 0.0
    %544 = vmatpush2.msra.mxu0 0.0
    %545 = vmatprep.subr.mxu0 0.0
    %546 = vmatpush2.msra.mxu0 0.0
    %547 = vmatprep.subr.mxu0 0.0
    %548 = vmatpush2.msra.mxu0 0.0
    %549 = vmatprep.mubr.f32.mxu0 0.0
    %550 = vmatmul.mubr.f32.gmra.mxu0 %v483
    %v551 = vpop.f32.mrf.mxu0
    %v552 = vadd.f32 0.0, %v551
    %v553 = vpop.f32.mrf.mxu0
    %554 = vdwg.mxu0
    %v555 = vadd.f32 %v478, %v552
    %v556 = vtanh.pop %v555
    %v557 = vxor.u32 %v555, 2147483648
    %v558 = vmul.f32 %v557, 1.442695
    %v559 = vpow.pop %v558
    %v560 = vadd.f32 %v559, 1.0
    %v561 = vrcp.pop %v560
    %v562 = vmul.f32 1.0, %v561
    %v563 = vsel %vm150, %v556, %v562
    %v564 = vmul.f32 %v563, %v466
    %566 = vrot.lane.b32.xlu0 %v563, 64
    %v567 = vpop.permute.xlu0 %566
    %v569 = vmul.f32 %v563, %v567
    %571 = vrot.lane.b32.xlu0 %v569, 32
    %v572 = vpop.permute.xlu0 %571
    %v574 = vadd.f32 %v564, %v572
    %v575 = vtanh.pop %v574
    %577 = vrot.lane.b32.xlu0 %v575, 64
    %v578 = vpop.permute.xlu0 %577
    %v580 = vmul.f32 %v563, %v578
    %582 = vrot.lane.b32.xlu0 %v580, 32
    %v583 = vpop.permute.xlu0 %582
    %585 = vst.msk [vmem:[#allocation3 + $0x6] sm:$0x3] %vm260, %v583
    %v586 = vld [vmem:[#allocation2 + $0x8] sm:$0x3]
    %v587 = vld [vmem:[%s3] sm:$0xff]
    %v588 = vld [vmem:[%s3 + $0x8] sm:$0xff]
    %v589 = vld [vmem:[%s3 + $0x10] sm:$0xff]
    %v590 = vld [vmem:[%s3 + $0x18] sm:$0xff]
    %v591 = vsel %vm156, %v583, 0
    %593 = vmatprep.subr.mxu0 0.0
    %594 = vmatpush1.msra.mxu0 0.0
    %595 = vmatprep.subr.mxu0 0.0
    %596 = vmatpush1.msra.mxu0 0.0
    %597 = vmatprep.subr.mxu0 0.0
    %598 = vmatpush1.msra.mxu0 0.0
    %599 = vmatprep.subr.mxu0 0.0
    %600 = vmatpush1.msra.mxu0 0.0
    %601 = vmatprep.subr.mxu0 0.0
    %602 = vmatpush1.msra.mxu0 0.0
    %603 = vmatprep.subr.mxu0 0.0
    %604 = vmatpush1.msra.mxu0 0.0
    %605 = vmatprep.subr.mxu0 0.0
    %606 = vmatpush1.msra.mxu0 0.0
    %607 = vmatprep.subr.mxu0 0.0
    %608 = vmatpush1.msra.mxu0 0.0
    %609 = vmatprep.subr.mxu0 0.0
    %610 = vmatpush1.msra.mxu0 0.0
    %611 = vmatprep.subr.mxu0 0.0
    %612 = vmatpush1.msra.mxu0 0.0
    %613 = vmatprep.subr.mxu0 0.0
    %614 = vmatpush1.msra.mxu0 0.0
    %615 = vmatprep.subr.mxu0 0.0
    %616 = vmatpush1.msra.mxu0 0.0
    %617 = vmatprep.subr.mxu0 0.0
    %618 = vmatpush1.msra.mxu0 %v590
    %619 = vmatprep.subr.mxu0 0.0
    %620 = vmatpush1.msra.mxu0 %v589
    %621 = vmatprep.subr.mxu0 0.0
    %622 = vmatpush1.msra.mxu0 %v588
    %623 = vmatprep.subr.mxu0 0.0
    %624 = vmatpush1.msra.mxu0 %v587
    %625 = vmatprep.subr.mxu0 0.0
    %626 = vmatpush2.msra.mxu0 0.0
    %627 = vmatprep.subr.mxu0 0.0
    %628 = vmatpush2.msra.mxu0 0.0
    %629 = vmatprep.subr.mxu0 0.0
    %630 = vmatpush2.msra.mxu0 0.0
    %631 = vmatprep.subr.mxu0 0.0
    %632 = vmatpush2.msra.mxu0 0.0
    %633 = vmatprep.subr.mxu0 0.0
    %634 = vmatpush2.msra.mxu0 0.0
    %635 = vmatprep.subr.mxu0 0.0
    %636 = vmatpush2.msra.mxu0 0.0
    %637 = vmatprep.subr.mxu0 0.0
    %638 = vmatpush2.msra.mxu0 0.0
    %639 = vmatprep.subr.mxu0 0.0
    %640 = vmatpush2.msra.mxu0 0.0
    %641 = vmatprep.subr.mxu0 0.0
    %642 = vmatpush2.msra.mxu0 0.0
    %643 = vmatprep.subr.mxu0 0.0
    %644 = vmatpush2.msra.mxu0 0.0
    %645 = vmatprep.subr.mxu0 0.0
    %646 = vmatpush2.msra.mxu0 0.0
    %647 = vmatprep.subr.mxu0 0.0
    %648 = vmatpush2.msra.mxu0 0.0
    %649 = vmatprep.subr.mxu0 0.0
    %650 = vmatpush2.msra.mxu0 0.0
    %651 = vmatprep.subr.mxu0 0.0
    %652 = vmatpush2.msra.mxu0 0.0
    %653 = vmatprep.subr.mxu0 0.0
    %654 = vmatpush2.msra.mxu0 0.0
    %655 = vmatprep.subr.mxu0 0.0
    %656 = vmatpush2.msra.mxu0 0.0
    %657 = vmatprep.mubr.f32.mxu0 0.0
    %658 = vmatmul.mubr.f32.gmra.mxu0 %v591
    %v659 = vpop.f32.mrf.mxu0
    %v660 = vadd.f32 0.0, %v659
    %v661 = vpop.f32.mrf.mxu0
    %662 = vdwg.mxu0
    %v663 = vadd.f32 %v586, %v660
    %v664 = vtanh.pop %v663
    %v665 = vxor.u32 %v663, 2147483648
    %v666 = vmul.f32 %v665, 1.442695
    %v667 = vpow.pop %v666
    %v668 = vadd.f32 %v667, 1.0
    %v669 = vrcp.pop %v668
    %v670 = vmul.f32 1.0, %v669
    %v671 = vsel %vm150, %v664, %v670
    %v672 = vmul.f32 %v671, %v574
    %674 = vrot.lane.b32.xlu0 %v671, 64
    %v675 = vpop.permute.xlu0 %674
    %v677 = vmul.f32 %v671, %v675
    %679 = vrot.lane.b32.xlu0 %v677, 32
    %v680 = vpop.permute.xlu0 %679
    %v682 = vadd.f32 %v672, %v680
    %v683 = vtanh.pop %v682
    %685 = vrot.lane.b32.xlu0 %v683, 64
    %v686 = vpop.permute.xlu0 %685
    %v688 = vmul.f32 %v671, %v686
    %690 = vrot.lane.b32.xlu0 %v688, 32
    %v691 = vpop.permute.xlu0 %690
    %693 = vst.msk [vmem:[#allocation3 + $0x8] sm:$0x3] %vm260, %v691
    %v694 = vld [vmem:[#allocation2 + $0xa] sm:$0x3]
    %v695 = vld [vmem:[%s3] sm:$0xff]
    %v696 = vld [vmem:[%s3 + $0x8] sm:$0xff]
    %v697 = vld [vmem:[%s3 + $0x10] sm:$0xff]
    %v698 = vld [vmem:[%s3 + $0x18] sm:$0xff]
    %v699 = vsel %vm156, %v691, 0
    %701 = vmatprep.subr.mxu0 0.0
    %702 = vmatpush1.msra.mxu0 0.0
    %703 = vmatprep.subr.mxu0 0.0
    %704 = vmatpush1.msra.mxu0 0.0
    %705 = vmatprep.subr.mxu0 0.0
    %706 = vmatpush1.msra.mxu0 0.0
    %707 = vmatprep.subr.mxu0 0.0
    %708 = vmatpush1.msra.mxu0 0.0
    %709 = vmatprep.subr.mxu0 0.0
    %710 = vmatpush1.msra.mxu0 0.0
    %711 = vmatprep.subr.mxu0 0.0
    %712 = vmatpush1.msra.mxu0 0.0
    %713 = vmatprep.subr.mxu0 0.0
    %714 = vmatpush1.msra.mxu0 0.0
    %715 = vmatprep.subr.mxu0 0.0
    %716 = vmatpush1.msra.mxu0 0.0
    %717 = vmatprep.subr.mxu0 0.0
    %718 = vmatpush1.msra.mxu0 0.0
    %719 = vmatprep.subr.mxu0 0.0
    %720 = vmatpush1.msra.mxu0 0.0
    %721 = vmatprep.subr.mxu0 0.0
    %722 = vmatpush1.msra.mxu0 0.0
    %723 = vmatprep.subr.mxu0 0.0
    %724 = vmatpush1.msra.mxu0 0.0
    %725 = vmatprep.subr.mxu0 0.0
    %726 = vmatpush1.msra.mxu0 %v698
    %727 = vmatprep.subr.mxu0 0.0
    %728 = vmatpush1.msra.mxu0 %v697
    %729 = vmatprep.subr.mxu0 0.0
    %730 = vmatpush1.msra.mxu0 %v696
    %731 = vmatprep.subr.mxu0 0.0
    %732 = vmatpush1.msra.mxu0 %v695
    %733 = vmatprep.subr.mxu0 0.0
    %734 = vmatpush2.msra.mxu0 0.0
    %735 = vmatprep.subr.mxu0 0.0
    %736 = vmatpush2.msra.mxu0 0.0
    %737 = vmatprep.subr.mxu0 0.0
    %738 = vmatpush2.msra.mxu0 0.0
    %739 = vmatprep.subr.mxu0 0.0
    %740 = vmatpush2.msra.mxu0 0.0
    %741 = vmatprep.subr.mxu0 0.0
    %742 = vmatpush2.msra.mxu0 0.0
    %743 = vmatprep.subr.mxu0 0.0
    %744 = vmatpush2.msra.mxu0 0.0
    %745 = vmatprep.subr.mxu0 0.0
    %746 = vmatpush2.msra.mxu0 0.0
    %747 = vmatprep.subr.mxu0 0.0
    %748 = vmatpush2.msra.mxu0 0.0
    %749 = vmatprep.subr.mxu0 0.0
    %750 = vmatpush2.msra.mxu0 0.0
    %751 = vmatprep.subr.mxu0 0.0
    %752 = vmatpush2.msra.mxu0 0.0
    %753 = vmatprep.subr.mxu0 0.0
    %754 = vmatpush2.msra.mxu0 0.0
    %755 = vmatprep.subr.mxu0 0.0
    %756 = vmatpush2.msra.mxu0 0.0
    %757 = vmatprep.subr.mxu0 0.0
    %758 = vmatpush2.msra.mxu0 0.0
    %759 = vmatprep.subr.mxu0 0.0
    %760 = vmatpush2.msra.mxu0 0.0
    %761 = vmatprep.subr.mxu0 0.0
    %762 = vmatpush2.msra.mxu0 0.0
    %763 = vmatprep.subr.mxu0 0.0
    %764 = vmatpush2.msra.mxu0 0.0
    %765 = vmatprep.mubr.f32.mxu0 0.0
    %766 = vmatmul.mubr.f32.gmra.mxu0 %v699
    %v767 = vpop.f32.mrf.mxu0
    %v768 = vadd.f32 0.0, %v767
    %v769 = vpop.f32.mrf.mxu0
    %770 = vdwg.mxu0
    %v771 = vadd.f32 %v694, %v768
    %v772 = vtanh.pop %v771
    %v773 = vxor.u32 %v771, 2147483648
    %v774 = vmul.f32 %v773, 1.442695
    %v775 = vpow.pop %v774
    %v776 = vadd.f32 %v775, 1.0
    %v777 = vrcp.pop %v776
    %v778 = vmul.f32 1.0, %v777
    %v779 = vsel %vm150, %v772, %v778
    %v780 = vmul.f32 %v779, %v682
    %782 = vrot.lane.b32.xlu0 %v779, 64
    %v783 = vpop.permute.xlu0 %782
    %v785 = vmul.f32 %v779, %v783
    %787 = vrot.lane.b32.xlu0 %v785, 32
    %v788 = vpop.permute.xlu0 %787
    %v790 = vadd.f32 %v780, %v788
    %v791 = vtanh.pop %v790
    %793 = vrot.lane.b32.xlu0 %v791, 64
    %v794 = vpop.permute.xlu0 %793
    %v796 = vmul.f32 %v779, %v794
    %798 = vrot.lane.b32.xlu0 %v796, 32
    %v799 = vpop.permute.xlu0 %798
    %801 = vst.msk [vmem:[#allocation3 + $0xa] sm:$0x3] %vm260, %v799
    %v802 = vld [vmem:[#allocation2 + $0xc] sm:$0x3]
    %v803 = vld [vmem:[%s3] sm:$0xff]
    %v804 = vld [vmem:[%s3 + $0x8] sm:$0xff]
    %v805 = vld [vmem:[%s3 + $0x10] sm:$0xff]
    %v806 = vld [vmem:[%s3 + $0x18] sm:$0xff]
    %v807 = vsel %vm156, %v799, 0
    %809 = vmatprep.subr.mxu0 0.0
    %810 = vmatpush1.msra.mxu0 0.0
    %811 = vmatprep.subr.mxu0 0.0
    %812 = vmatpush1.msra.mxu0 0.0
    %813 = vmatprep.subr.mxu0 0.0
    %814 = vmatpush1.msra.mxu0 0.0
    %815 = vmatprep.subr.mxu0 0.0
    %816 = vmatpush1.msra.mxu0 0.0
    %817 = vmatprep.subr.mxu0 0.0
    %818 = vmatpush1.msra.mxu0 0.0
    %819 = vmatprep.subr.mxu0 0.0
    %820 = vmatpush1.msra.mxu0 0.0
    %821 = vmatprep.subr.mxu0 0.0
    %822 = vmatpush1.msra.mxu0 0.0
    %823 = vmatprep.subr.mxu0 0.0
    %824 = vmatpush1.msra.mxu0 0.0
    %825 = vmatprep.subr.mxu0 0.0
    %826 = vmatpush1.msra.mxu0 0.0
    %827 = vmatprep.subr.mxu0 0.0
    %828 = vmatpush1.msra.mxu0 0.0
    %829 = vmatprep.subr.mxu0 0.0
    %830 = vmatpush1.msra.mxu0 0.0
    %831 = vmatprep.subr.mxu0 0.0
    %832 = vmatpush1.msra.mxu0 0.0
    %833 = vmatprep.subr.mxu0 0.0
    %834 = vmatpush1.msra.mxu0 %v806
    %835 = vmatprep.subr.mxu0 0.0
    %836 = vmatpush1.msra.mxu0 %v805
    %837 = vmatprep.subr.mxu0 0.0
    %838 = vmatpush1.msra.mxu0 %v804
    %839 = vmatprep.subr.mxu0 0.0
    %840 = vmatpush1.msra.mxu0 %v803
    %841 = vmatprep.subr.mxu0 0.0
    %842 = vmatpush2.msra.mxu0 0.0
    %843 = vmatprep.subr.mxu0 0.0
    %844 = vmatpush2.msra.mxu0 0.0
    %845 = vmatprep.subr.mxu0 0.0
    %846 = vmatpush2.msra.mxu0 0.0
    %847 = vmatprep.subr.mxu0 0.0
    %848 = vmatpush2.msra.mxu0 0.0
    %849 = vmatprep.subr.mxu0 0.0
    %850 = vmatpush2.msra.mxu0 0.0
    %851 = vmatprep.subr.mxu0 0.0
    %852 = vmatpush2.msra.mxu0 0.0
    %853 = vmatprep.subr.mxu0 0.0
    %854 = vmatpush2.msra.mxu0 0.0
    %855 = vmatprep.subr.mxu0 0.0
    %856 = vmatpush2.msra.mxu0 0.0
    %857 = vmatprep.subr.mxu0 0.0
    %858 = vmatpush2.msra.mxu0 0.0
    %859 = vmatprep.subr.mxu0 0.0
    %860 = vmatpush2.msra.mxu0 0.0
    %861 = vmatprep.subr.mxu0 0.0
    %862 = vmatpush2.msra.mxu0 0.0
    %863 = vmatprep.subr.mxu0 0.0
    %864 = vmatpush2.msra.mxu0 0.0
    %865 = vmatprep.subr.mxu0 0.0
    %866 = vmatpush2.msra.mxu0 0.0
    %867 = vmatprep.subr.mxu0 0.0
    %868 = vmatpush2.msra.mxu0 0.0
    %869 = vmatprep.subr.mxu0 0.0
    %870 = vmatpush2.msra.mxu0 0.0
    %871 = vmatprep.subr.mxu0 0.0
    %872 = vmatpush2.msra.mxu0 0.0
    %873 = vmatprep.mubr.f32.mxu0 0.0
    %874 = vmatmul.mubr.f32.gmra.mxu0 %v807
    %v875 = vpop.f32.mrf.mxu0
    %v876 = vadd.f32 0.0, %v875
    %v877 = vpop.f32.mrf.mxu0
    %878 = vdwg.mxu0
    %v879 = vadd.f32 %v802, %v876
    %v880 = vtanh.pop %v879
    %v881 = vxor.u32 %v879, 2147483648
    %v882 = vmul.f32 %v881, 1.442695
    %v883 = vpow.pop %v882
    %v884 = vadd.f32 %v883, 1.0
    %v885 = vrcp.pop %v884
    %v886 = vmul.f32 1.0, %v885
    %v887 = vsel %vm150, %v880, %v886
    %v888 = vmul.f32 %v887, %v790
    %890 = vrot.lane.b32.xlu0 %v887, 64
    %v891 = vpop.permute.xlu0 %890
    %v893 = vmul.f32 %v887, %v891
    %895 = vrot.lane.b32.xlu0 %v893, 32
    %v896 = vpop.permute.xlu0 %895
    %v898 = vadd.f32 %v888, %v896
    %v899 = vtanh.pop %v898
    %901 = vrot.lane.b32.xlu0 %v899, 64
    %v902 = vpop.permute.xlu0 %901
    %v904 = vmul.f32 %v887, %v902
    %906 = vrot.lane.b32.xlu0 %v904, 32
    %v907 = vpop.permute.xlu0 %906
    %909 = vst.msk [vmem:[#allocation3 + $0xc] sm:$0x3] %vm260, %v907
    %v910 = vld [vmem:[#allocation2 + $0xe] sm:$0x3]
    %v911 = vld [vmem:[%s3] sm:$0xff]
    %v912 = vld [vmem:[%s3 + $0x8] sm:$0xff]
    %v913 = vld [vmem:[%s3 + $0x10] sm:$0xff]
    %v914 = vld [vmem:[%s3 + $0x18] sm:$0xff]
    %v915 = vsel %vm156, %v907, 0
    %917 = vmatprep.subr.mxu0 0.0
    %918 = vmatpush1.msra.mxu0 0.0
    %919 = vmatprep.subr.mxu0 0.0
    %920 = vmatpush1.msra.mxu0 0.0
    %921 = vmatprep.subr.mxu0 0.0
    %922 = vmatpush1.msra.mxu0 0.0
    %923 = vmatprep.subr.mxu0 0.0
    %924 = vmatpush1.msra.mxu0 0.0
    %925 = vmatprep.subr.mxu0 0.0
    %926 = vmatpush1.msra.mxu0 0.0
    %927 = vmatprep.subr.mxu0 0.0
    %928 = vmatpush1.msra.mxu0 0.0
    %929 = vmatprep.subr.mxu0 0.0
    %930 = vmatpush1.msra.mxu0 0.0
    %931 = vmatprep.subr.mxu0 0.0
    %932 = vmatpush1.msra.mxu0 0.0
    %933 = vmatprep.subr.mxu0 0.0
    %934 = vmatpush1.msra.mxu0 0.0
    %935 = vmatprep.subr.mxu0 0.0
    %936 = vmatpush1.msra.mxu0 0.0
    %937 = vmatprep.subr.mxu0 0.0
    %938 = vmatpush1.msra.mxu0 0.0
    %939 = vmatprep.subr.mxu0 0.0
    %940 = vmatpush1.msra.mxu0 0.0
    %941 = vmatprep.subr.mxu0 0.0
    %942 = vmatpush1.msra.mxu0 %v914
    %943 = vmatprep.subr.mxu0 0.0
    %944 = vmatpush1.msra.mxu0 %v913
    %945 = vmatprep.subr.mxu0 0.0
    %946 = vmatpush1.msra.mxu0 %v912
    %947 = vmatprep.subr.mxu0 0.0
    %948 = vmatpush1.msra.mxu0 %v911
    %949 = vmatprep.subr.mxu0 0.0
    %950 = vmatpush2.msra.mxu0 0.0
    %951 = vmatprep.subr.mxu0 0.0
    %952 = vmatpush2.msra.mxu0 0.0
    %953 = vmatprep.subr.mxu0 0.0
    %954 = vmatpush2.msra.mxu0 0.0
    %955 = vmatprep.subr.mxu0 0.0
    %956 = vmatpush2.msra.mxu0 0.0
    %957 = vmatprep.subr.mxu0 0.0
    %958 = vmatpush2.msra.mxu0 0.0
    %959 = vmatprep.subr.mxu0 0.0
    %960 = vmatpush2.msra.mxu0 0.0
    %961 = vmatprep.subr.mxu0 0.0
    %962 = vmatpush2.msra.mxu0 0.0
    %963 = vmatprep.subr.mxu0 0.0
    %964 = vmatpush2.msra.mxu0 0.0
    %965 = vmatprep.subr.mxu0 0.0
    %966 = vmatpush2.msra.mxu0 0.0
    %967 = vmatprep.subr.mxu0 0.0
    %968 = vmatpush2.msra.mxu0 0.0
    %969 = vmatprep.subr.mxu0 0.0
    %970 = vmatpush2.msra.mxu0 0.0
    %971 = vmatprep.subr.mxu0 0.0
    %972 = vmatpush2.msra.mxu0 0.0
    %973 = vmatprep.subr.mxu0 0.0
    %974 = vmatpush2.msra.mxu0 0.0
    %975 = vmatprep.subr.mxu0 0.0
    %976 = vmatpush2.msra.mxu0 0.0
    %977 = vmatprep.subr.mxu0 0.0
    %978 = vmatpush2.msra.mxu0 0.0
    %979 = vmatprep.subr.mxu0 0.0
    %980 = vmatpush2.msra.mxu0 0.0
    %981 = vmatprep.mubr.f32.mxu0 0.0
    %982 = vmatmul.mubr.f32.gmra.mxu0 %v915
    %v983 = vpop.f32.mrf.mxu0
    %v984 = vadd.f32 0.0, %v983
    %v985 = vpop.f32.mrf.mxu0
    %986 = vdwg.mxu0
    %v987 = vadd.f32 %v910, %v984
    %v988 = vtanh.pop %v987
    %v989 = vxor.u32 %v987, 2147483648
    %v990 = vmul.f32 %v989, 1.442695
    %v991 = vpow.pop %v990
    %v992 = vadd.f32 %v991, 1.0
    %v993 = vrcp.pop %v992
    %v994 = vmul.f32 1.0, %v993
    %v995 = vsel %vm150, %v988, %v994
    %v996 = vmul.f32 %v995, %v898
    %998 = vrot.lane.b32.xlu0 %v995, 64
    %v999 = vpop.permute.xlu0 %998
    %v1001 = vmul.f32 %v995, %v999
    %1003 = vrot.lane.b32.xlu0 %v1001, 32
    %v1004 = vpop.permute.xlu0 %1003
    %v1006 = vadd.f32 %v996, %v1004
    %v1007 = vtanh.pop %v1006
    %1009 = vrot.lane.b32.xlu0 %v1007, 64
    %v1010 = vpop.permute.xlu0 %1009
    %v1012 = vmul.f32 %v995, %v1010
    %1014 = vrot.lane.b32.xlu0 %v1012, 32
    %v1015 = vpop.permute.xlu0 %1014
    %1017 = vst.msk [vmem:[#allocation3 + $0xe] sm:$0x3] %vm260, %v1015
    %v1018 = vld [vmem:[#allocation3] sm:$0xff]
    %v1019 = vld [vmem:[#allocation3 + $0x8] sm:$0xff]
    %v1020 = vld [vmem:[%s4] sm:$0xff]
    %v1021 = vld [vmem:[%s4 + $0x8] sm:$0xff]
    %v1022 = vld [vmem:[%s4 + $0x10] sm:$0xff]
    %v1023 = vld [vmem:[%s4 + $0x18] sm:$0xff]
    %v1024 = vld [vmem:[%s5] sm:$0x1]
    %v1026 = vlaneseq
    %v1027 = vshrl.u32 %v1026, 7
    %v1028 = vsub.s32 0, %v1027
    %v1029 = vrot.slane %v1024, %v1028
    %v1032 = vsel %vm156, %v1018, 0
    %v1035 = vsel %vm156, %v1019, 0
    %1037 = vmatprep.subr.mxu0 0.0
    %1038 = vmatpush1.msra.mxu0 0.0
    %1039 = vmatprep.subr.mxu0 0.0
    %1040 = vmatpush1.msra.mxu0 0.0
    %1041 = vmatprep.subr.mxu0 0.0
    %1042 = vmatpush1.msra.mxu0 0.0
    %1043 = vmatprep.subr.mxu0 0.0
    %1044 = vmatpush1.msra.mxu0 0.0
    %1045 = vmatprep.subr.mxu0 0.0
    %1046 = vmatpush1.msra.mxu0 0.0
    %1047 = vmatprep.subr.mxu0 0.0
    %1048 = vmatpush1.msra.mxu0 0.0
    %1049 = vmatprep.subr.mxu0 0.0
    %1050 = vmatpush1.msra.mxu0 0.0
    %1051 = vmatprep.subr.mxu0 0.0
    %1052 = vmatpush1.msra.mxu0 0.0
    %1053 = vmatprep.subr.mxu0 0.0
    %1054 = vmatpush1.msra.mxu0 0.0
    %1055 = vmatprep.subr.mxu0 0.0
    %1056 = vmatpush1.msra.mxu0 0.0
    %1057 = vmatprep.subr.mxu0 0.0
    %1058 = vmatpush1.msra.mxu0 0.0
    %1059 = vmatprep.subr.mxu0 0.0
    %1060 = vmatpush1.msra.mxu0 0.0
    %1061 = vmatprep.subr.mxu0 0.0
    %1062 = vmatpush1.msra.mxu0 %v1023
    %1063 = vmatprep.subr.mxu0 0.0
    %1064 = vmatpush1.msra.mxu0 %v1022
    %1065 = vmatprep.subr.mxu0 0.0
    %1066 = vmatpush1.msra.mxu0 %v1021
    %1067 = vmatprep.subr.mxu0 0.0
    %1068 = vmatpush1.msra.mxu0 %v1020
    %1069 = vmatprep.subr.mxu0 0.0
    %1070 = vmatpush2.msra.mxu0 0.0
    %1071 = vmatprep.subr.mxu0 0.0
    %1072 = vmatpush2.msra.mxu0 0.0
    %1073 = vmatprep.subr.mxu0 0.0
    %1074 = vmatpush2.msra.mxu0 0.0
    %1075 = vmatprep.subr.mxu0 0.0
    %1076 = vmatpush2.msra.mxu0 0.0
    %1077 = vmatprep.subr.mxu0 0.0
    %1078 = vmatpush2.msra.mxu0 0.0
    %1079 = vmatprep.subr.mxu0 0.0
    %1080 = vmatpush2.msra.mxu0 0.0
    %1081 = vmatprep.subr.mxu0 0.0
    %1082 = vmatpush2.msra.mxu0 0.0
    %1083 = vmatprep.subr.mxu0 0.0
    %1084 = vmatpush2.msra.mxu0 0.0
    %1085 = vmatprep.subr.mxu0 0.0
    %1086 = vmatpush2.msra.mxu0 0.0
    %1087 = vmatprep.subr.mxu0 0.0
    %1088 = vmatpush2.msra.mxu0 0.0
    %1089 = vmatprep.subr.mxu0 0.0
    %1090 = vmatpush2.msra.mxu0 0.0
    %1091 = vmatprep.subr.mxu0 0.0
    %1092 = vmatpush2.msra.mxu0 0.0
    %1093 = vmatprep.subr.mxu0 0.0
    %1094 = vmatpush2.msra.mxu0 0.0
    %1095 = vmatprep.subr.mxu0 0.0
    %1096 = vmatpush2.msra.mxu0 0.0
    %1097 = vmatprep.subr.mxu0 0.0
    %1098 = vmatpush2.msra.mxu0 0.0
    %1099 = vmatprep.subr.mxu0 0.0
    %1100 = vmatpush2.msra.mxu0 0.0
    %1101 = vmatprep.mubr.f32.mxu0 0.0
    %1102 = vmatmul.mubr.f32.gmra.mxu0 %v1032
    %v1103 = vpop.f32.mrf.mxu0
    %v1104 = vadd.f32 %v1029, %v1103
    %v1105 = vpop.f32.mrf.mxu0
    %1106 = vmatprep.mubr.f32.mxu0 0.0
    %1107 = vmatmul.mubr.f32.gmra.mxu0 %v1035
    %v1108 = vpop.f32.mrf.mxu0
    %v1109 = vadd.f32 %v1029, %v1108
    %v1110 = vpop.f32.mrf.mxu0
    %1111 = vdwg.mxu0
    %vm1112 = vcmask 64512
    %1113 = vst.msk [vmem:[%s6] sm:$0xff] %vm1112, %v1104
    %1114 = vst.msk [vmem:[%s6 + $0x8] sm:$0xff] %vm1112, %v1109
    // Predicated region
    $region34: #{tpu_custom_call.1} parent=1 // pred_check
      _
    $region35: #{tpu_custom_call.1} parent=1 // pred_check_branch
      %1116 = sbr.rel (0) target = $region37
    $region36: #{tpu_custom_call.1} parent=1 // pred_region
      _
    $region37: #{tpu_custom_call.1} parent=1 // pred_fallthru
      _
    // Predicated region
    $region38: #{tpu_custom_call.1} parent=1 // pred_check
      _
    $region39: #{tpu_custom_call.1} parent=1 // pred_check_branch
      %1118 = sbr.rel (0) target = $region41
    $region40: #{tpu_custom_call.1} parent=1 // pred_region
      _
    $region41: #{tpu_custom_call.1} parent=1 // pred_fallthru
      _
    %1119 = vsyncpa [#allocation5], 1
    %1120 = vsyncpa [#allocation7], 1

</llo_original>
